<compile_context>
chip_gen: v7x
topology: tpu7x:2x2x1
jax: 0.10.0
libtpu: 0.0.40
codegen_flags: <defaults>
</compile_context>

<pallas_src>
import math

import jax
import jax.numpy as jnp
from jax.experimental import pallas as pl
from jax.experimental.pallas import tpu as pltpu

BN_EPS = 1e-5


# ------------------------------- Pallas kernel -------------------------------

def _head2_kernel(x1_ref, x2_ref, w1a_ref, w1b_ref, b1_ref, s2_ref, t2_ref,
                  w2_ref, b2_ref, out_ref, h_ref):
    # First Linear with BN11/BN12 folded in, split at the concat boundary.
    # Activations arrive as fp32 tiles (no wrapper-side cast pass) and are cast to bf16
    # on the VPU; accumulation is fp32 on the MXU.
    h = jnp.dot(x1_ref[...].astype(jnp.bfloat16), w1a_ref[...],
                preferred_element_type=jnp.float32)
    h = h + jnp.dot(x2_ref[...].astype(jnp.bfloat16), w1b_ref[...],
                    preferred_element_type=jnp.float32)
    # bias + ReLU + BN2 affine (eval-mode running stats).
    h = jnp.maximum(h + b1_ref[...], 0.0)
    h = h * s2_ref[...] + t2_ref[...]
    # Hidden written back in bf16 (largest output stream); the same bf16 value feeds
    # the second matmul so out / hidden stay mutually consistent.
    h_bf = h.astype(jnp.bfloat16)
    h_ref[...] = h_bf
    out = jnp.dot(h_bf, w2_ref[...], preferred_element_type=jnp.float32)
    out_ref[...] = (out + b2_ref[...]).astype(out_ref.dtype)


# ------------------------------ Pallas wrapper --------------------------------

def _round_up(x, m):
    return ((x + m - 1) // m) * m


def _head2_pallas(x1f, x2f, w1a, w1b, b1, s2, t2, w2, b2):
    """Fused  out = BN2(relu(x1@w1a + x2@w1b + b1)) @ w2 + b2 ; also returns the hidden."""
    M, K1 = x1f.shape
    K2 = x2f.shape[1]
    H = w1a.shape[1]
    Cp = w2.shape[1]
    assert w1b.shape == (K2, H) and w2.shape[0] == H and Cp % 128 == 0

    # M tile: big tiles amortize the ~0.35 us per-step overhead; cap so that when M is
    # large there are >= 2 grid steps (keeps both v7x TensorCores busy on the parallel axis).
    tm = min(_round_up(M, 8), 512)
    if M > 256:
        tm = min(tm, _round_up(-(-M // 2), 8))
    grid_m = pl.cdiv(M, tm)       # ragged last block handled by Pallas (masked writes)

    # VMEM budget from the real per-step footprint (double buffering counted exactly once).
    db = 2
    step_bytes = (db * tm * (K1 + K2) * 4                  # fp32 activation tiles
                  + db * ((K1 + K2) * H + H * Cp) * 2      # bf16 weights (constant index)
                  + db * (3 * H + Cp) * 4                  # bias / BN rows
                  + db * (tm * Cp * 4 + tm * H * 2))       # out fp32, hidden bf16
    # Clamp to 48 MiB -> >= 25% headroom even on v7x's 64 MiB VMEM.
    vmem_limit = int(min(max(step_bytes + (4 << 20), 8 << 20), 48 << 20))

    cost = pl.CostEstimate(
        flops=2 * M * (K1 + K2) * H + 2 * M * H * Cp,
        transcendentals=0,
        bytes_accessed=(M * (K1 + K2) * 4
                        + ((K1 + K2) * H + H * Cp) * 2 + (3 * H + Cp) * 4
                        + M * Cp * 4 + M * H * 2))

    out, h = pl.pallas_call(
        _head2_kernel,
        out_shape=(jax.ShapeDtypeStruct((M, Cp), jnp.float32),
                   jax.ShapeDtypeStruct((M, H), jnp.bfloat16)),
        grid=(grid_m,),
        in_specs=[
            pl.BlockSpec((tm, K1), lambda i: (i, 0)),    # x1 tile (fp32, cast in-kernel)
            pl.BlockSpec((tm, K2), lambda i: (i, 0)),    # x2 tile (fp32, cast in-kernel)
            pl.BlockSpec((K1, H), lambda i: (0, 0)),     # W1[:K1]  (BN11 folded, bf16)
            pl.BlockSpec((K2, H), lambda i: (0, 0)),     # W1[K1:]  (BN12 folded, bf16)
            pl.BlockSpec((1, H), lambda i: (0, 0)),      # b1 (folded)
            pl.BlockSpec((1, H), lambda i: (0, 0)),      # BN2 scale
            pl.BlockSpec((1, H), lambda i: (0, 0)),      # BN2 shift
            pl.BlockSpec((H, Cp), lambda i: (0, 0)),     # W_o (lane-padded, bf16)
            pl.BlockSpec((1, Cp), lambda i: (0, 0)),     # b_o (lane-padded)
        ],
        out_specs=(pl.BlockSpec((tm, Cp), lambda i: (i, 0)),
                   pl.BlockSpec((tm, H), lambda i: (i, 0))),
        compiler_params=pltpu.CompilerParams(
            dimension_semantics=("parallel",),
            vmem_limit_bytes=vmem_limit),
        cost_estimate=cost,
    )(x1f, x2f, w1a, w1b, b1, s2, t2, w2, b2)

    return out, h


# ------------------------- Parameter init (synthetic) --------------------------

def init_params(key, inf_1, inf_2, out_f, hidden=512):
    """Matches PyTorch defaults: Linear U(-1/sqrt(fan_in), ..), BN gamma=1/beta=0."""
    k1, k2, k3, k4 = jax.random.split(key, 4)
    fan_in = inf_1 + inf_2
    b = 1.0 / math.sqrt(fan_in)
    w_l = jax.random.uniform(k1, (fan_in, hidden), jnp.float32, -b, b)
    b_l = jax.random.uniform(k2, (hidden,), jnp.float32, -b, b)
    bo = 1.0 / math.sqrt(hidden)
    w_o = jax.random.uniform(k3, (hidden, out_f), jnp.float32, -bo, bo)
    b_o = jax.random.uniform(k4, (out_f,), jnp.float32, -bo, bo)

    def bn(c):
        return dict(gamma=jnp.ones((c,), jnp.float32),
                    beta=jnp.zeros((c,), jnp.float32),
                    mean=jnp.zeros((c,), jnp.float32),
                    var=jnp.ones((c,), jnp.float32))

    return dict(w_l=w_l, b_l=b_l, w_o=w_o, b_o=b_o,
                bn11=bn(inf_1), bn12=bn(inf_2), bn2=bn(hidden))


# ----------------------- One-time BN fold / weight prep ------------------------

def _bn_scale_shift(bn):
    s = bn["gamma"] / jnp.sqrt(bn["var"] + BN_EPS)
    t = bn["beta"] - bn["mean"] * s
    return s, t


def prepare_params(params):
    """Fold BN11/BN12 into the first Linear, pad/cast weights once (inference constants)."""
    K1 = params["bn11"]["gamma"].shape[0]
    w_l, b_l = params["w_l"], params["b_l"]
    H = w_l.shape[1]
    C = params["w_o"].shape[1]
    Cp = _round_up(C, 128)                      # lane-dense padded output width

    s11, t11 = _bn_scale_shift(params["bn11"])
    s12, t12 = _bn_scale_shift(params["bn12"])
    # (x*s + t) @ W + b  =  x @ (W*s) + (t @ W + b), split at the concat boundary.
    w1a = (w_l[:K1] * s11[:, None]).astype(jnp.bfloat16)
    w1b = (w_l[K1:] * s12[:, None]).astype(jnp.bfloat16)
    b1 = (b_l + t11 @ w_l[:K1] + t12 @ w_l[K1:]).reshape(1, H).astype(jnp.float32)

    s2h, t2h = _bn_scale_shift(params["bn2"])   # BN2 affine applied after ReLU in-kernel

    w2 = jnp.zeros((H, Cp), jnp.bfloat16).at[:, :C].set(params["w_o"].astype(jnp.bfloat16))
    b2 = jnp.zeros((1, Cp), jnp.float32).at[:, :C].set(params["b_o"].reshape(1, C))

    return dict(w1a=w1a, w1b=w1b, b1=b1,
                s2=s2h.reshape(1, H).astype(jnp.float32),
                t2=t2h.reshape(1, H).astype(jnp.float32),
                w2=w2, b2=b2)


# ----------------------------------- Forward -----------------------------------

def head2_forward(prepared, x1, x2, *, out_f):
    """Returns (out, hidden) matching Head2.forward (eval-mode BN / dropout)."""
    B = x1.shape[0]
    x1f = jnp.reshape(x1, (B, -1)).astype(jnp.float32)   # Flatten
    x2f = jnp.reshape(x2, (B, -1)).astype(jnp.float32)   # Flatten
    out_p, h = _head2_pallas(x1f, x2f, prepared["w1a"], prepared["w1b"], prepared["b1"],
                             prepared["s2"], prepared["t2"], prepared["w2"], prepared["b2"])
    # Dropout(0.75) is identity in eval mode, so the returned hidden is h itself (bf16).
    return out_p[:, :out_f], h


# ------------------------------------- Main -------------------------------------

if __name__ == "__main__":
    key = jax.random.PRNGKey(0)
    k1, k2, kp = jax.random.split(key, 3)

    # Small shapes consistent with the module: Flatten handles N-D inputs.
    B = 2
    x1 = jax.random.normal(k1, (B, 4, 16, 16), jnp.float32)   # inf_1 = 1024
    x2 = jax.random.normal(k2, (B, 16, 4, 4), jnp.float32)    # inf_2 = 256
    inf_1 = 4 * 16 * 16
    inf_2 = 16 * 4 * 4
    out_f = 10

    params = init_params(kp, inf_1, inf_2, out_f)
    prepared = prepare_params(params)                          # hoisted one-time constants

    fwd = jax.jit(head2_forward, static_argnames=("out_f",))
    out, hidden = fwd(prepared, x1, x2, out_f=out_f)
    out, hidden = jax.block_until_ready((out, hidden))

    assert out.shape == (B, out_f)
    assert hidden.shape == (B, 512)
    assert bool(jnp.all(jnp.isfinite(out.astype(jnp.float32))))
    assert bool(jnp.all(jnp.isfinite(hidden.astype(jnp.float32))))
    print("KERNEL_OK")
</pallas_src>

<mosaic_0001>
module attributes {stable_mosaic.version = 11 : i64} {
  func.func @_head2_kernel(%arg0: i32, %arg1: memref<8x1024xf32, #tpu.memory_space<vmem>>, %arg2: memref<8x256xf32, #tpu.memory_space<vmem>>, %arg3: memref<1024x512xbf16, #tpu.memory_space<vmem>>, %arg4: memref<256x512xbf16, #tpu.memory_space<vmem>>, %arg5: memref<1x512xf32, #tpu.memory_space<vmem>>, %arg6: memref<1x512xf32, #tpu.memory_space<vmem>>, %arg7: memref<1x512xf32, #tpu.memory_space<vmem>>, %arg8: memref<512x128xbf16, #tpu.memory_space<vmem>>, %arg9: memref<1x128xf32, #tpu.memory_space<vmem>>, %arg10: memref<8x128xf32, #tpu.memory_space<vmem>>, %arg11: memref<8x512xbf16, #tpu.memory_space<vmem>>) attributes {dimension_semantics = [#tpu.dimension_semantics<parallel>], iteration_bounds = array<i64: 1>, scalar_prefetch = 0 : i64, scratch_operands = 0 : i64, tpu.core_type = #tpu.core_type<tc>, window_params = [{transform_indices = @transform_0, window_bounds = array<i64: 8, 1024>}, {transform_indices = @transform_1, window_bounds = array<i64: 8, 256>}, {pipeline_mode = #tpu.pipeline_mode<synchronous>, transform_indices = @transform_2, window_bounds = array<i64: 1024, 512>}, {pipeline_mode = #tpu.pipeline_mode<synchronous>, transform_indices = @transform_3, window_bounds = array<i64: 256, 512>}, {pipeline_mode = #tpu.pipeline_mode<synchronous>, transform_indices = @transform_4, window_bounds = array<i64: 1, 512>}, {pipeline_mode = #tpu.pipeline_mode<synchronous>, transform_indices = @transform_5, window_bounds = array<i64: 1, 512>}, {pipeline_mode = #tpu.pipeline_mode<synchronous>, transform_indices = @transform_6, window_bounds = array<i64: 1, 512>}, {pipeline_mode = #tpu.pipeline_mode<synchronous>, transform_indices = @transform_7, window_bounds = array<i64: 512, 128>}, {pipeline_mode = #tpu.pipeline_mode<synchronous>, transform_indices = @transform_8, window_bounds = array<i64: 1, 128>}, {transform_indices = @transform_9, window_bounds = array<i64: 8, 128>}, {transform_indices = @transform_10, window_bounds = array<i64: 8, 512>}]} {
    %c0 = arith.constant 0 : index
    %c0_0 = arith.constant 0 : index
    %0 = vector.load %arg1[%c0, %c0_0] : memref<8x1024xf32, #tpu.memory_space<vmem>>, vector<8x1024xf32>
    %1 = arith.truncf %0 : vector<8x1024xf32> to vector<8x1024xbf16>
    %c0_1 = arith.constant 0 : index
    %c0_2 = arith.constant 0 : index
    %2 = vector.load %arg3[%c0_1, %c0_2] : memref<1024x512xbf16, #tpu.memory_space<vmem>>, vector<1024x512xbf16>
    %cst = arith.constant dense<0.000000e+00> : vector<8x512xf32>
    %3 = tpu.matmul %1, %2, %cst {dimension_numbers = #tpu.dot_dimension_numbers<[1], [0], [0], [1], [0, 0, 1, 1], [], []>} : vector<8x1024xbf16>, vector<1024x512xbf16>, vector<8x512xf32> -> vector<8x512xf32>
    %c0_3 = arith.constant 0 : index
    %c0_4 = arith.constant 0 : index
    %4 = vector.load %arg2[%c0_3, %c0_4] : memref<8x256xf32, #tpu.memory_space<vmem>>, vector<8x256xf32>
    %5 = arith.truncf %4 : vector<8x256xf32> to vector<8x256xbf16>
    %c0_5 = arith.constant 0 : index
    %c0_6 = arith.constant 0 : index
    %6 = vector.load %arg4[%c0_5, %c0_6] : memref<256x512xbf16, #tpu.memory_space<vmem>>, vector<256x512xbf16>
    %cst_7 = arith.constant dense<0.000000e+00> : vector<8x512xf32>
    %7 = tpu.matmul %5, %6, %cst_7 {dimension_numbers = #tpu.dot_dimension_numbers<[1], [0], [0], [1], [0, 0, 1, 1], [], []>} : vector<8x256xbf16>, vector<256x512xbf16>, vector<8x512xf32> -> vector<8x512xf32>
    %8 = arith.addf %3, %7 : vector<8x512xf32>
    %c0_8 = arith.constant 0 : index
    %c0_9 = arith.constant 0 : index
    %9 = vector.load %arg5[%c0_8, %c0_9] : memref<1x512xf32, #tpu.memory_space<vmem>>, vector<1x512xf32>
    %10 = vector.broadcast %9 : vector<1x512xf32> to vector<8x512xf32>
    %11 = arith.addf %8, %10 : vector<8x512xf32>
    %cst_10 = arith.constant 0.000000e+00 : f32
    %12 = vector.broadcast %cst_10 : f32 to vector<8x512xf32>
    %13 = arith.maximumf %11, %12 : vector<8x512xf32>
    %c0_11 = arith.constant 0 : index
    %c0_12 = arith.constant 0 : index
    %14 = vector.load %arg6[%c0_11, %c0_12] : memref<1x512xf32, #tpu.memory_space<vmem>>, vector<1x512xf32>
    %15 = vector.broadcast %14 : vector<1x512xf32> to vector<8x512xf32>
    %16 = arith.mulf %13, %15 : vector<8x512xf32>
    %c0_13 = arith.constant 0 : index
    %c0_14 = arith.constant 0 : index
    %17 = vector.load %arg7[%c0_13, %c0_14] : memref<1x512xf32, #tpu.memory_space<vmem>>, vector<1x512xf32>
    %18 = vector.broadcast %17 : vector<1x512xf32> to vector<8x512xf32>
    %19 = arith.addf %16, %18 : vector<8x512xf32>
    %20 = arith.truncf %19 : vector<8x512xf32> to vector<8x512xbf16>
    %c0_15 = arith.constant 0 : index
    %c0_16 = arith.constant 0 : index
    %21 = vector.load %arg11[%c0_15, %c0_16] : memref<8x512xbf16, #tpu.memory_space<vmem>>, vector<8x512xbf16>
    tpu.vector_store %arg11[%c0_15, %c0_16], %20 {strides = array<i32>} : memref<8x512xbf16, #tpu.memory_space<vmem>>, vector<8x512xbf16>,
    %c0_17 = arith.constant 0 : index
    %c0_18 = arith.constant 0 : index
    %22 = vector.load %arg8[%c0_17, %c0_18] : memref<512x128xbf16, #tpu.memory_space<vmem>>, vector<512x128xbf16>
    %cst_19 = arith.constant dense<0.000000e+00> : vector<8x128xf32>
    %23 = tpu.matmul %20, %22, %cst_19 {dimension_numbers = #tpu.dot_dimension_numbers<[1], [0], [0], [1], [0, 0, 1, 1], [], []>} : vector<8x512xbf16>, vector<512x128xbf16>, vector<8x128xf32> -> vector<8x128xf32>
    %c0_20 = arith.constant 0 : index
    %c0_21 = arith.constant 0 : index
    %24 = vector.load %arg9[%c0_20, %c0_21] : memref<1x128xf32, #tpu.memory_space<vmem>>, vector<1x128xf32>
    %25 = vector.broadcast %24 : vector<1x128xf32> to vector<8x128xf32>
    %26 = arith.addf %23, %25 : vector<8x128xf32>
    %c0_22 = arith.constant 0 : index
    %c0_23 = arith.constant 0 : index
    %27 = vector.load %arg10[%c0_22, %c0_23] : memref<8x128xf32, #tpu.memory_space<vmem>>, vector<8x128xf32>
    tpu.vector_store %arg10[%c0_22, %c0_23], %26 {strides = array<i32>} : memref<8x128xf32, #tpu.memory_space<vmem>>, vector<8x128xf32>,
    return
  }
  func.func @transform_0(%arg0: i32) -> (i32, i32) {
    %c0_i32 = arith.constant 0 : i32
    %c0_i32_0 = arith.constant 0 : i32
    return %arg0, %c0_i32 : i32, i32
  }
  func.func @transform_1(%arg0: i32) -> (i32, i32) {
    %c0_i32 = arith.constant 0 : i32
    %c0_i32_0 = arith.constant 0 : i32
    return %arg0, %c0_i32 : i32, i32
  }
  func.func @transform_2(%arg0: i32) -> (i32, i32) {
    %c0_i32 = arith.constant 0 : i32
    %c0_i32_0 = arith.constant 0 : i32
    %c0_i32_1 = arith.constant 0 : i32
    return %c0_i32, %c0_i32_0 : i32, i32
  }
  func.func @transform_3(%arg0: i32) -> (i32, i32) {
    %c0_i32 = arith.constant 0 : i32
    %c0_i32_0 = arith.constant 0 : i32
    %c0_i32_1 = arith.constant 0 : i32
    return %c0_i32, %c0_i32_0 : i32, i32
  }
  func.func @transform_4(%arg0: i32) -> (i32, i32) {
    %c0_i32 = arith.constant 0 : i32
    %c0_i32_0 = arith.constant 0 : i32
    %c0_i32_1 = arith.constant 0 : i32
    return %c0_i32, %c0_i32_0 : i32, i32
  }
  func.func @transform_5(%arg0: i32) -> (i32, i32) {
    %c0_i32 = arith.constant 0 : i32
    %c0_i32_0 = arith.constant 0 : i32
    %c0_i32_1 = arith.constant 0 : i32
    return %c0_i32, %c0_i32_0 : i32, i32
  }
  func.func @transform_6(%arg0: i32) -> (i32, i32) {
    %c0_i32 = arith.constant 0 : i32
    %c0_i32_0 = arith.constant 0 : i32
    %c0_i32_1 = arith.constant 0 : i32
    return %c0_i32, %c0_i32_0 : i32, i32
  }
  func.func @transform_7(%arg0: i32) -> (i32, i32) {
    %c0_i32 = arith.constant 0 : i32
    %c0_i32_0 = arith.constant 0 : i32
    %c0_i32_1 = arith.constant 0 : i32
    return %c0_i32, %c0_i32_0 : i32, i32
  }
  func.func @transform_8(%arg0: i32) -> (i32, i32) {
    %c0_i32 = arith.constant 0 : i32
    %c0_i32_0 = arith.constant 0 : i32
    %c0_i32_1 = arith.constant 0 : i32
    return %c0_i32, %c0_i32_0 : i32, i32
  }
  func.func @transform_9(%arg0: i32) -> (i32, i32) {
    %c0_i32 = arith.constant 0 : i32
    %c0_i32_0 = arith.constant 0 : i32
    return %arg0, %c0_i32 : i32, i32
  }
  func.func @transform_10(%arg0: i32) -> (i32, i32) {
    %c0_i32 = arith.constant 0 : i32
    %c0_i32_0 = arith.constant 0 : i32
    return %arg0, %c0_i32 : i32, i32
  }
}

</mosaic_0001>

<llo_original>
// kernel: head2_forward.1
$region0: #{head2_forward.1}
  #allocation0 [shape = 'u32[]', space=smem, size = 0x4, offset = 0x4, fixed_abs, tag = 'smem constant byte address 0x4 - core index']
  #allocation1 [shape = 'u32[144,128]{1,0:T(1,128)}', space=vmem, size = 0x12000, scoped, tag = 'internal scratch']
  %s0 = inlined_call_operand.vmem [shape: f32[2,1024], index: 0, kind: input, shape index: {}]
  %s1 = inlined_call_operand.vmem [shape: f32[2,256], index: 1, kind: input, shape index: {}]
  %s2 = inlined_call_operand.hbm [shape: bf16[1024,512], index: 2, kind: input, shape index: {}]
  %s3 = inlined_call_operand.hbm [shape: bf16[256,512], index: 3, kind: input, shape index: {}]
  %s4 = inlined_call_operand.vmem [shape: f32[1,512], index: 4, kind: input, shape index: {}]
  %s5 = inlined_call_operand.vmem [shape: f32[1,512], index: 5, kind: input, shape index: {}]
  %s6 = inlined_call_operand.vmem [shape: f32[1,512], index: 6, kind: input, shape index: {}]
  %s7 = inlined_call_operand.vmem [shape: bf16[512,128], index: 7, kind: input, shape index: {}]
  %s8 = inlined_call_operand.vmem [shape: f32[1,128], index: 8, kind: input, shape index: {}]
  %s9 = inlined_call_operand.hbm [shape: f32[2,128], index: 9, kind: output, shape index: {0}]
  %s10 = inlined_call_operand.hbm [shape: bf16[2,512], index: 10, kind: output, shape index: {1}]
  %11 = xla_tuple %s9, %s10
  %s12 = sld [smem:[#allocation0]]
  $region62: #{head2_forward.1} parent=0
    _
  %s14 = ssub.s32 1, %s12
  %s15 = scalar_select 0, %s14, %s12
  $region1: #{head2_forward.1} parent=0
    #allocation2 [shape = 'u8[1048576]{0}', space=vmem, size = 0x100000, scoped, tag = 'input window, operand 2, single buffered']
    #allocation3 [shape = 's32[1]{0}', space=sflag, size = 0x4, scoped, tag = 'scoped memory for head2_forward.1']
    #allocation4 [shape = 's32[1]{0}', space=sflag, size = 0x4, scoped, tag = 'scoped memory for head2_forward.1']
    #allocation5 [shape = 'u8[262144]{0}', space=vmem, size = 0x40000, scoped, tag = 'input window, operand 3, single buffered']
    #allocation6 [shape = 's32[1]{0}', space=sflag, size = 0x4, scoped, tag = 'scoped memory for head2_forward.1']
    #allocation7 [shape = 'u8[4096]{0}', space=vmem, size = 0x1000, scoped, tag = 'output window, operand 0, single buffered']
    #allocation8 [shape = 'u8[8192]{0}', space=vmem, size = 0x2000, scoped, tag = 'output window, operand 1, single buffered']
    #allocation9 [shape = 's32[1]{0}', space=sflag, size = 0x4, scoped, tag = 'scoped memory for head2_forward.1']
    %16 = vsyncpa [#allocation3], 0
    %17 = vsyncpa [#allocation6], 0
    %18 = vsyncpa [#allocation4], 0
    %19 = vsyncpa [#allocation9], 0
    // Predicated region
    $region2: #{head2_forward.1} parent=1 // pred_check
      _
    $region3: #{head2_forward.1} parent=1 // pred_check_branch
      %21 = sbr.rel (0) target = $region5
    $region4: #{head2_forward.1} parent=1 // pred_region
      _
    $region5: #{head2_forward.1} parent=1 // pred_fallthru
      _
    // Predicated region
    $region6: #{head2_forward.1} parent=1 // pred_check
      _
    $region7: #{head2_forward.1} parent=1 // pred_check_branch
      %23 = sbr.rel (0) target = $region9
    $region8: #{head2_forward.1} parent=1 // pred_region
      _
    $region9: #{head2_forward.1} parent=1 // pred_fallthru
      _
    // Predicated region
    $region10: #{head2_forward.1} parent=1 // pred_check
      _
    $region11: #{head2_forward.1} parent=1 // pred_check_branch
      %25 = sbr.rel (0) target = $region13
    $region12: #{head2_forward.1} parent=1 // pred_region
      %s27 = ssub.s32 32768, 32768
      %28 = vsyncadd [#allocation3], %s27
      %s29 = sshll.u32 [#allocation2], 4
      %s30 = int_to_ptr.vmem [resolvable:$true] %s29
      %35 = dma.hbm_to_vmem [thread:$0]  %s2, 32768, %s30, [#allocation3], 256, 256, 16
    $region13: #{head2_forward.1} parent=1 // pred_fallthru
      _
    // Predicated region
    $region14: #{head2_forward.1} parent=1 // pred_check
      _
    $region15: #{head2_forward.1} parent=1 // pred_check_branch
      %37 = sbr.rel (0) target = $region17
    $region16: #{head2_forward.1} parent=1 // pred_region
      %s39 = ssub.s32 8192, 8192
      %40 = vsyncadd [#allocation6], %s39
      %s41 = sshll.u32 [#allocation5], 4
      %s42 = int_to_ptr.vmem [resolvable:$true] %s41
      %47 = dma.hbm_to_vmem [thread:$0]  %s3, 8192, %s42, [#allocation6], 256, 256, 16
    $region17: #{head2_forward.1} parent=1 // pred_fallthru
      _
    // Predicated region
    $region18: #{head2_forward.1} parent=1 // pred_check
      _
    $region19: #{head2_forward.1} parent=1 // pred_check_branch
      %49 = sbr.rel (0) target = $region21
    $region20: #{head2_forward.1} parent=1 // pred_region
      _
    $region21: #{head2_forward.1} parent=1 // pred_fallthru
      _
    // Predicated region
    $region22: #{head2_forward.1} parent=1 // pred_check
      _
    $region23: #{head2_forward.1} parent=1 // pred_check_branch
      %51 = sbr.rel (0) target = $region25
    $region24: #{head2_forward.1} parent=1 // pred_region
      _
    $region25: #{head2_forward.1} parent=1 // pred_fallthru
      _
    // Predicated region
    $region26: #{head2_forward.1} parent=1 // pred_check
      _
    $region27: #{head2_forward.1} parent=1 // pred_check_branch
      %53 = sbr.rel (0) target = $region29
    $region28: #{head2_forward.1} parent=1 // pred_region
      _
    $region29: #{head2_forward.1} parent=1 // pred_fallthru
      _
    // Predicated region
    $region30: #{head2_forward.1} parent=1 // pred_check
      _
    $region31: #{head2_forward.1} parent=1 // pred_check_branch
      %55 = sbr.rel (0) target = $region33
    $region32: #{head2_forward.1} parent=1 // pred_region
      _
    $region33: #{head2_forward.1} parent=1 // pred_fallthru
      _
    // Predicated region
    $region34: #{head2_forward.1} parent=1 // pred_check
      _
    $region35: #{head2_forward.1} parent=1 // pred_check_branch
      %57 = sbr.rel (0) target = $region37
    $region36: #{head2_forward.1} parent=1 // pred_region
      _
    $region37: #{head2_forward.1} parent=1 // pred_fallthru
      _
    // Predicated region
    $region38: #{head2_forward.1} parent=1 // pred_check
      _
    $region39: #{head2_forward.1} parent=1 // pred_check_branch
      %59 = sbr.rel (0) target = $region41
    $region40: #{head2_forward.1} parent=1 // pred_region
      %60 = dma.done [#allocation3], 32768
    $region41: #{head2_forward.1} parent=1 // pred_fallthru
      _
    // Predicated region
    $region42: #{head2_forward.1} parent=1 // pred_check
      _
    $region43: #{head2_forward.1} parent=1 // pred_check_branch
      %62 = sbr.rel (0) target = $region45
    $region44: #{head2_forward.1} parent=1 // pred_region
      %63 = dma.done [#allocation6], 8192
    $region45: #{head2_forward.1} parent=1 // pred_fallthru
      _
    %v65 = vld [vmem:[%s0] sm:$0xff]
    %v66 = vld [vmem:[%s0 + $0x8] sm:$0xff]
    %v67 = vld [vmem:[%s0 + $0x10] sm:$0xff]
    %v68 = vld [vmem:[%s0 + $0x18] sm:$0xff]
    %v69 = vld [vmem:[%s0 + $0x20] sm:$0xff]
    %v70 = vld [vmem:[%s0 + $0x28] sm:$0xff]
    %v71 = vld [vmem:[%s0 + $0x30] sm:$0xff]
    %v72 = vld [vmem:[%s0 + $0x38] sm:$0xff]
    %v81 = vcombine.low %v65, %v67
    %v82 = vcombine.high %v65, %v67
    %v83 = vcombine.low %v69, %v71
    %v84 = vcombine.high %v69, %v71
    %v86 = vunpack.c.l.s4 1983009808
    %v87 = vunpack.c.0.s8 %v86
    %v88 = vlaneseq
    %v89 = vshrl.u32 %v88, 7
    %v90 = vsub.s32 %v87, %v89
    %v91 = vrot.slane %v81, %v90
    %v93 = vunpack.c.l.s4 1983009808
    %v94 = vunpack.c.0.s8 %v93
    %v95 = vlaneseq
    %v96 = vshrl.u32 %v95, 7
    %v97 = vsub.s32 %v94, %v96
    %v98 = vrot.slane %v82, %v97
    %v100 = vunpack.c.l.s4 1983009808
    %v101 = vunpack.c.0.s8 %v100
    %v102 = vlaneseq
    %v103 = vshrl.u32 %v102, 7
    %v104 = vsub.s32 %v101, %v103
    %v105 = vrot.slane %v83, %v104
    %v107 = vunpack.c.l.s4 1983009808
    %v108 = vunpack.c.0.s8 %v107
    %v109 = vlaneseq
    %v110 = vshrl.u32 %v109, 7
    %v111 = vsub.s32 %v108, %v110
    %v112 = vrot.slane %v84, %v111
    %v113 = vcombine.low %v91, %v105
    %v114 = vcombine.high %v91, %v105
    %v115 = vcombine.low %v98, %v112
    %v116 = vcombine.high %v98, %v112
    %v117 = vcombine.low %v66, %v68
    %v118 = vcombine.high %v66, %v68
    %v119 = vcombine.low %v70, %v72
    %v120 = vcombine.high %v70, %v72
    %v122 = vunpack.c.l.s4 1983009808
    %v123 = vunpack.c.0.s8 %v122
    %v124 = vlaneseq
    %v125 = vshrl.u32 %v124, 7
    %v126 = vsub.s32 %v123, %v125
    %v127 = vrot.slane %v117, %v126
    %v129 = vunpack.c.l.s4 1983009808
    %v130 = vunpack.c.0.s8 %v129
    %v131 = vlaneseq
    %v132 = vshrl.u32 %v131, 7
    %v133 = vsub.s32 %v130, %v132
    %v134 = vrot.slane %v118, %v133
    %v136 = vunpack.c.l.s4 1983009808
    %v137 = vunpack.c.0.s8 %v136
    %v138 = vlaneseq
    %v139 = vshrl.u32 %v138, 7
    %v140 = vsub.s32 %v137, %v139
    %v141 = vrot.slane %v119, %v140
    %v143 = vunpack.c.l.s4 1983009808
    %v144 = vunpack.c.0.s8 %v143
    %v145 = vlaneseq
    %v146 = vshrl.u32 %v145, 7
    %v147 = vsub.s32 %v144, %v146
    %v148 = vrot.slane %v120, %v147
    %v149 = vcombine.low %v127, %v141
    %v150 = vcombine.high %v127, %v141
    %v151 = vcombine.low %v134, %v148
    %v152 = vcombine.high %v134, %v148
    %v161 = vpack.c.bf16 %v113, %v113
    %v162 = vpack.c.bf16 %v114, %v114
    %v163 = vpack.c.bf16 %v115, %v115
    %v164 = vpack.c.bf16 %v116, %v116
    %v165 = vpack.c.bf16 %v149, %v149
    %v166 = vpack.c.bf16 %v150, %v150
    %v167 = vpack.c.bf16 %v151, %v151
    %v168 = vpack.c.bf16 %v152, %v152
    %v169 = vld [vmem:[#allocation2] sm:$0xff]
    %v170 = vld [vmem:[#allocation2 + $0x8] sm:$0xff]
    %v171 = vld [vmem:[#allocation2 + $0x10] sm:$0xff]
    %v172 = vld [vmem:[#allocation2 + $0x18] sm:$0xff]
    %v173 = vld [vmem:[#allocation2 + $0x20] sm:$0xff]
    %v174 = vld [vmem:[#allocation2 + $0x28] sm:$0xff]
    %v175 = vld [vmem:[#allocation2 + $0x30] sm:$0xff]
    %v176 = vld [vmem:[#allocation2 + $0x38] sm:$0xff]
    %v177 = vld [vmem:[#allocation2 + $0x40] sm:$0xff]
    %v178 = vld [vmem:[#allocation2 + $0x48] sm:$0xff]
    %v179 = vld [vmem:[#allocation2 + $0x50] sm:$0xff]
    %v180 = vld [vmem:[#allocation2 + $0x58] sm:$0xff]
    %v181 = vld [vmem:[#allocation2 + $0x60] sm:$0xff]
    %v182 = vld [vmem:[#allocation2 + $0x68] sm:$0xff]
    %v183 = vld [vmem:[#allocation2 + $0x70] sm:$0xff]
    %v184 = vld [vmem:[#allocation2 + $0x78] sm:$0xff]
    %v185 = vld [vmem:[#allocation2 + $0x80] sm:$0xff]
    %v186 = vld [vmem:[#allocation2 + $0x88] sm:$0xff]
    %v187 = vld [vmem:[#allocation2 + $0x90] sm:$0xff]
    %v188 = vld [vmem:[#allocation2 + $0x98] sm:$0xff]
    %v189 = vld [vmem:[#allocation2 + $0xa0] sm:$0xff]
    %v190 = vld [vmem:[#allocation2 + $0xa8] sm:$0xff]
    %v191 = vld [vmem:[#allocation2 + $0xb0] sm:$0xff]
    %v192 = vld [vmem:[#allocation2 + $0xb8] sm:$0xff]
    %v193 = vld [vmem:[#allocation2 + $0xc0] sm:$0xff]
    %v194 = vld [vmem:[#allocation2 + $0xc8] sm:$0xff]
    %v195 = vld [vmem:[#allocation2 + $0xd0] sm:$0xff]
    %v196 = vld [vmem:[#allocation2 + $0xd8] sm:$0xff]
    %v197 = vld [vmem:[#allocation2 + $0xe0] sm:$0xff]
    %v198 = vld [vmem:[#allocation2 + $0xe8] sm:$0xff]
    %v199 = vld [vmem:[#allocation2 + $0xf0] sm:$0xff]
    %v200 = vld [vmem:[#allocation2 + $0xf8] sm:$0xff]
    %v201 = vld [vmem:[#allocation2 + $0x100] sm:$0xff]
    %v202 = vld [vmem:[#allocation2 + $0x108] sm:$0xff]
    %v203 = vld [vmem:[#allocation2 + $0x110] sm:$0xff]
    %v204 = vld [vmem:[#allocation2 + $0x118] sm:$0xff]
    %v205 = vld [vmem:[#allocation2 + $0x120] sm:$0xff]
    %v206 = vld [vmem:[#allocation2 + $0x128] sm:$0xff]
    %v207 = vld [vmem:[#allocation2 + $0x130] sm:$0xff]
    %v208 = vld [vmem:[#allocation2 + $0x138] sm:$0xff]
    %v209 = vld [vmem:[#allocation2 + $0x140] sm:$0xff]
    %v210 = vld [vmem:[#allocation2 + $0x148] sm:$0xff]
    %v211 = vld [vmem:[#allocation2 + $0x150] sm:$0xff]
    %v212 = vld [vmem:[#allocation2 + $0x158] sm:$0xff]
    %v213 = vld [vmem:[#allocation2 + $0x160] sm:$0xff]
    %v214 = vld [vmem:[#allocation2 + $0x168] sm:$0xff]
    %v215 = vld [vmem:[#allocation2 + $0x170] sm:$0xff]
    %v216 = vld [vmem:[#allocation2 + $0x178] sm:$0xff]
    %v217 = vld [vmem:[#allocation2 + $0x180] sm:$0xff]
    %v218 = vld [vmem:[#allocation2 + $0x188] sm:$0xff]
    %v219 = vld [vmem:[#allocation2 + $0x190] sm:$0xff]
    %v220 = vld [vmem:[#allocation2 + $0x198] sm:$0xff]
    %v221 = vld [vmem:[#allocation2 + $0x1a0] sm:$0xff]
    %v222 = vld [vmem:[#allocation2 + $0x1a8] sm:$0xff]
    %v223 = vld [vmem:[#allocation2 + $0x1b0] sm:$0xff]
    %v224 = vld [vmem:[#allocation2 + $0x1b8] sm:$0xff]
    %v225 = vld [vmem:[#allocation2 + $0x1c0] sm:$0xff]
    %v226 = vld [vmem:[#allocation2 + $0x1c8] sm:$0xff]
    %v227 = vld [vmem:[#allocation2 + $0x1d0] sm:$0xff]
    %v228 = vld [vmem:[#allocation2 + $0x1d8] sm:$0xff]
    %v229 = vld [vmem:[#allocation2 + $0x1e0] sm:$0xff]
    %v230 = vld [vmem:[#allocation2 + $0x1e8] sm:$0xff]
    %v231 = vld [vmem:[#allocation2 + $0x1f0] sm:$0xff]
    %v232 = vld [vmem:[#allocation2 + $0x1f8] sm:$0xff]
    %v233 = vld [vmem:[#allocation2 + $0x200] sm:$0xff]
    %v234 = vld [vmem:[#allocation2 + $0x208] sm:$0xff]
    %v235 = vld [vmem:[#allocation2 + $0x210] sm:$0xff]
    %v236 = vld [vmem:[#allocation2 + $0x218] sm:$0xff]
    %v237 = vld [vmem:[#allocation2 + $0x220] sm:$0xff]
    %v238 = vld [vmem:[#allocation2 + $0x228] sm:$0xff]
    %v239 = vld [vmem:[#allocation2 + $0x230] sm:$0xff]
    %v240 = vld [vmem:[#allocation2 + $0x238] sm:$0xff]
    %v241 = vld [vmem:[#allocation2 + $0x240] sm:$0xff]
    %v242 = vld [vmem:[#allocation2 + $0x248] sm:$0xff]
    %v243 = vld [vmem:[#allocation2 + $0x250] sm:$0xff]
    %v244 = vld [vmem:[#allocation2 + $0x258] sm:$0xff]
    %v245 = vld [vmem:[#allocation2 + $0x260] sm:$0xff]
    %v246 = vld [vmem:[#allocation2 + $0x268] sm:$0xff]
    %v247 = vld [vmem:[#allocation2 + $0x270] sm:$0xff]
    %v248 = vld [vmem:[#allocation2 + $0x278] sm:$0xff]
    %v249 = vld [vmem:[#allocation2 + $0x280] sm:$0xff]
    %v250 = vld [vmem:[#allocation2 + $0x288] sm:$0xff]
    %v251 = vld [vmem:[#allocation2 + $0x290] sm:$0xff]
    %v252 = vld [vmem:[#allocation2 + $0x298] sm:$0xff]
    %v253 = vld [vmem:[#allocation2 + $0x2a0] sm:$0xff]
    %v254 = vld [vmem:[#allocation2 + $0x2a8] sm:$0xff]
    %v255 = vld [vmem:[#allocation2 + $0x2b0] sm:$0xff]
    %v256 = vld [vmem:[#allocation2 + $0x2b8] sm:$0xff]
    %v257 = vld [vmem:[#allocation2 + $0x2c0] sm:$0xff]
    %v258 = vld [vmem:[#allocation2 + $0x2c8] sm:$0xff]
    %v259 = vld [vmem:[#allocation2 + $0x2d0] sm:$0xff]
    %v260 = vld [vmem:[#allocation2 + $0x2d8] sm:$0xff]
    %v261 = vld [vmem:[#allocation2 + $0x2e0] sm:$0xff]
    %v262 = vld [vmem:[#allocation2 + $0x2e8] sm:$0xff]
    %v263 = vld [vmem:[#allocation2 + $0x2f0] sm:$0xff]
    %v264 = vld [vmem:[#allocation2 + $0x2f8] sm:$0xff]
    %v265 = vld [vmem:[#allocation2 + $0x300] sm:$0xff]
    %v266 = vld [vmem:[#allocation2 + $0x308] sm:$0xff]
    %v267 = vld [vmem:[#allocation2 + $0x310] sm:$0xff]
    %v268 = vld [vmem:[#allocation2 + $0x318] sm:$0xff]
    %v269 = vld [vmem:[#allocation2 + $0x320] sm:$0xff]
    %v270 = vld [vmem:[#allocation2 + $0x328] sm:$0xff]
    %v271 = vld [vmem:[#allocation2 + $0x330] sm:$0xff]
    %v272 = vld [vmem:[#allocation2 + $0x338] sm:$0xff]
    %v273 = vld [vmem:[#allocation2 + $0x340] sm:$0xff]
    %v274 = vld [vmem:[#allocation2 + $0x348] sm:$0xff]
    %v275 = vld [vmem:[#allocation2 + $0x350] sm:$0xff]
    %v276 = vld [vmem:[#allocation2 + $0x358] sm:$0xff]
    %v277 = vld [vmem:[#allocation2 + $0x360] sm:$0xff]
    %v278 = vld [vmem:[#allocation2 + $0x368] sm:$0xff]
    %v279 = vld [vmem:[#allocation2 + $0x370] sm:$0xff]
    %v280 = vld [vmem:[#allocation2 + $0x378] sm:$0xff]
    %v281 = vld [vmem:[#allocation2 + $0x380] sm:$0xff]
    %v282 = vld [vmem:[#allocation2 + $0x388] sm:$0xff]
    %v283 = vld [vmem:[#allocation2 + $0x390] sm:$0xff]
    %v284 = vld [vmem:[#allocation2 + $0x398] sm:$0xff]
    %v285 = vld [vmem:[#allocation2 + $0x3a0] sm:$0xff]
    %v286 = vld [vmem:[#allocation2 + $0x3a8] sm:$0xff]
    %v287 = vld [vmem:[#allocation2 + $0x3b0] sm:$0xff]
    %v288 = vld [vmem:[#allocation2 + $0x3b8] sm:$0xff]
    %v289 = vld [vmem:[#allocation2 + $0x3c0] sm:$0xff]
    %v290 = vld [vmem:[#allocation2 + $0x3c8] sm:$0xff]
    %v291 = vld [vmem:[#allocation2 + $0x3d0] sm:$0xff]
    %v292 = vld [vmem:[#allocation2 + $0x3d8] sm:$0xff]
    %v293 = vld [vmem:[#allocation2 + $0x3e0] sm:$0xff]
    %v294 = vld [vmem:[#allocation2 + $0x3e8] sm:$0xff]
    %v295 = vld [vmem:[#allocation2 + $0x3f0] sm:$0xff]
    %v296 = vld [vmem:[#allocation2 + $0x3f8] sm:$0xff]
    %v297 = vld [vmem:[#allocation2 + $0x400] sm:$0xff]
    %v298 = vld [vmem:[#allocation2 + $0x408] sm:$0xff]
    %v299 = vld [vmem:[#allocation2 + $0x410] sm:$0xff]
    %v300 = vld [vmem:[#allocation2 + $0x418] sm:$0xff]
    %v301 = vld [vmem:[#allocation2 + $0x420] sm:$0xff]
    %v302 = vld [vmem:[#allocation2 + $0x428] sm:$0xff]
    %v303 = vld [vmem:[#allocation2 + $0x430] sm:$0xff]
    %v304 = vld [vmem:[#allocation2 + $0x438] sm:$0xff]
    %v305 = vld [vmem:[#allocation2 + $0x440] sm:$0xff]
    %v306 = vld [vmem:[#allocation2 + $0x448] sm:$0xff]
    %v307 = vld [vmem:[#allocation2 + $0x450] sm:$0xff]
    %v308 = vld [vmem:[#allocation2 + $0x458] sm:$0xff]
    %v309 = vld [vmem:[#allocation2 + $0x460] sm:$0xff]
    %v310 = vld [vmem:[#allocation2 + $0x468] sm:$0xff]
    %v311 = vld [vmem:[#allocation2 + $0x470] sm:$0xff]
    %v312 = vld [vmem:[#allocation2 + $0x478] sm:$0xff]
    %v313 = vld [vmem:[#allocation2 + $0x480] sm:$0xff]
    %v314 = vld [vmem:[#allocation2 + $0x488] sm:$0xff]
    %v315 = vld [vmem:[#allocation2 + $0x490] sm:$0xff]
    %v316 = vld [vmem:[#allocation2 + $0x498] sm:$0xff]
    %v317 = vld [vmem:[#allocation2 + $0x4a0] sm:$0xff]
    %v318 = vld [vmem:[#allocation2 + $0x4a8] sm:$0xff]
    %v319 = vld [vmem:[#allocation2 + $0x4b0] sm:$0xff]
    %v320 = vld [vmem:[#allocation2 + $0x4b8] sm:$0xff]
    %v321 = vld [vmem:[#allocation2 + $0x4c0] sm:$0xff]
    %v322 = vld [vmem:[#allocation2 + $0x4c8] sm:$0xff]
    %v323 = vld [vmem:[#allocation2 + $0x4d0] sm:$0xff]
    %v324 = vld [vmem:[#allocation2 + $0x4d8] sm:$0xff]
    %v325 = vld [vmem:[#allocation2 + $0x4e0] sm:$0xff]
    %v326 = vld [vmem:[#allocation2 + $0x4e8] sm:$0xff]
    %v327 = vld [vmem:[#allocation2 + $0x4f0] sm:$0xff]
    %v328 = vld [vmem:[#allocation2 + $0x4f8] sm:$0xff]
    %v329 = vld [vmem:[#allocation2 + $0x500] sm:$0xff]
    %v330 = vld [vmem:[#allocation2 + $0x508] sm:$0xff]
    %v331 = vld [vmem:[#allocation2 + $0x510] sm:$0xff]
    %v332 = vld [vmem:[#allocation2 + $0x518] sm:$0xff]
    %v333 = vld [vmem:[#allocation2 + $0x520] sm:$0xff]
    %v334 = vld [vmem:[#allocation2 + $0x528] sm:$0xff]
    %v335 = vld [vmem:[#allocation2 + $0x530] sm:$0xff]
    %v336 = vld [vmem:[#allocation2 + $0x538] sm:$0xff]
    %v337 = vld [vmem:[#allocation2 + $0x540] sm:$0xff]
    %v338 = vld [vmem:[#allocation2 + $0x548] sm:$0xff]
    %v339 = vld [vmem:[#allocation2 + $0x550] sm:$0xff]
    %v340 = vld [vmem:[#allocation2 + $0x558] sm:$0xff]
    %v341 = vld [vmem:[#allocation2 + $0x560] sm:$0xff]
    %v342 = vld [vmem:[#allocation2 + $0x568] sm:$0xff]
    %v343 = vld [vmem:[#allocation2 + $0x570] sm:$0xff]
    %v344 = vld [vmem:[#allocation2 + $0x578] sm:$0xff]
    %v345 = vld [vmem:[#allocation2 + $0x580] sm:$0xff]
    %v346 = vld [vmem:[#allocation2 + $0x588] sm:$0xff]
    %v347 = vld [vmem:[#allocation2 + $0x590] sm:$0xff]
    %v348 = vld [vmem:[#allocation2 + $0x598] sm:$0xff]
    %v349 = vld [vmem:[#allocation2 + $0x5a0] sm:$0xff]
    %v350 = vld [vmem:[#allocation2 + $0x5a8] sm:$0xff]
    %v351 = vld [vmem:[#allocation2 + $0x5b0] sm:$0xff]
    %v352 = vld [vmem:[#allocation2 + $0x5b8] sm:$0xff]
    %v353 = vld [vmem:[#allocation2 + $0x5c0] sm:$0xff]
    %v354 = vld [vmem:[#allocation2 + $0x5c8] sm:$0xff]
    %v355 = vld [vmem:[#allocation2 + $0x5d0] sm:$0xff]
    %v356 = vld [vmem:[#allocation2 + $0x5d8] sm:$0xff]
    %v357 = vld [vmem:[#allocation2 + $0x5e0] sm:$0xff]
    %v358 = vld [vmem:[#allocation2 + $0x5e8] sm:$0xff]
    %v359 = vld [vmem:[#allocation2 + $0x5f0] sm:$0xff]
    %v360 = vld [vmem:[#allocation2 + $0x5f8] sm:$0xff]
    %v361 = vld [vmem:[#allocation2 + $0x600] sm:$0xff]
    %v362 = vld [vmem:[#allocation2 + $0x608] sm:$0xff]
    %v363 = vld [vmem:[#allocation2 + $0x610] sm:$0xff]
    %v364 = vld [vmem:[#allocation2 + $0x618] sm:$0xff]
    %v365 = vld [vmem:[#allocation2 + $0x620] sm:$0xff]
    %v366 = vld [vmem:[#allocation2 + $0x628] sm:$0xff]
    %v367 = vld [vmem:[#allocation2 + $0x630] sm:$0xff]
    %v368 = vld [vmem:[#allocation2 + $0x638] sm:$0xff]
    %v369 = vld [vmem:[#allocation2 + $0x640] sm:$0xff]
    %v370 = vld [vmem:[#allocation2 + $0x648] sm:$0xff]
    %v371 = vld [vmem:[#allocation2 + $0x650] sm:$0xff]
    %v372 = vld [vmem:[#allocation2 + $0x658] sm:$0xff]
    %v373 = vld [vmem:[#allocation2 + $0x660] sm:$0xff]
    %v374 = vld [vmem:[#allocation2 + $0x668] sm:$0xff]
    %v375 = vld [vmem:[#allocation2 + $0x670] sm:$0xff]
    %v376 = vld [vmem:[#allocation2 + $0x678] sm:$0xff]
    %v377 = vld [vmem:[#allocation2 + $0x680] sm:$0xff]
    %v378 = vld [vmem:[#allocation2 + $0x688] sm:$0xff]
    %v379 = vld [vmem:[#allocation2 + $0x690] sm:$0xff]
    %v380 = vld [vmem:[#allocation2 + $0x698] sm:$0xff]
    %v381 = vld [vmem:[#allocation2 + $0x6a0] sm:$0xff]
    %v382 = vld [vmem:[#allocation2 + $0x6a8] sm:$0xff]
    %v383 = vld [vmem:[#allocation2 + $0x6b0] sm:$0xff]
    %v384 = vld [vmem:[#allocation2 + $0x6b8] sm:$0xff]
    %v385 = vld [vmem:[#allocation2 + $0x6c0] sm:$0xff]
    %v386 = vld [vmem:[#allocation2 + $0x6c8] sm:$0xff]
    %v387 = vld [vmem:[#allocation2 + $0x6d0] sm:$0xff]
    %v388 = vld [vmem:[#allocation2 + $0x6d8] sm:$0xff]
    %v389 = vld [vmem:[#allocation2 + $0x6e0] sm:$0xff]
    %v390 = vld [vmem:[#allocation2 + $0x6e8] sm:$0xff]
    %v391 = vld [vmem:[#allocation2 + $0x6f0] sm:$0xff]
    %v392 = vld [vmem:[#allocation2 + $0x6f8] sm:$0xff]
    %v393 = vld [vmem:[#allocation2 + $0x700] sm:$0xff]
    %v394 = vld [vmem:[#allocation2 + $0x708] sm:$0xff]
    %v395 = vld [vmem:[#allocation2 + $0x710] sm:$0xff]
    %v396 = vld [vmem:[#allocation2 + $0x718] sm:$0xff]
    %v397 = vld [vmem:[#allocation2 + $0x720] sm:$0xff]
    %v398 = vld [vmem:[#allocation2 + $0x728] sm:$0xff]
    %v399 = vld [vmem:[#allocation2 + $0x730] sm:$0xff]
    %v400 = vld [vmem:[#allocation2 + $0x738] sm:$0xff]
    %v401 = vld [vmem:[#allocation2 + $0x740] sm:$0xff]
    %v402 = vld [vmem:[#allocation2 + $0x748] sm:$0xff]
    %v403 = vld [vmem:[#allocation2 + $0x750] sm:$0xff]
    %v404 = vld [vmem:[#allocation2 + $0x758] sm:$0xff]
    %v405 = vld [vmem:[#allocation2 + $0x760] sm:$0xff]
    %v406 = vld [vmem:[#allocation2 + $0x768] sm:$0xff]
    %v407 = vld [vmem:[#allocation2 + $0x770] sm:$0xff]
    %v408 = vld [vmem:[#allocation2 + $0x778] sm:$0xff]
    %v409 = vld [vmem:[#allocation2 + $0x780] sm:$0xff]
    %v410 = vld [vmem:[#allocation2 + $0x788] sm:$0xff]
    %v411 = vld [vmem:[#allocation2 + $0x790] sm:$0xff]
    %v412 = vld [vmem:[#allocation2 + $0x798] sm:$0xff]
    %v413 = vld [vmem:[#allocation2 + $0x7a0] sm:$0xff]
    %v414 = vld [vmem:[#allocation2 + $0x7a8] sm:$0xff]
    %v415 = vld [vmem:[#allocation2 + $0x7b0] sm:$0xff]
    %v416 = vld [vmem:[#allocation2 + $0x7b8] sm:$0xff]
    %v417 = vld [vmem:[#allocation2 + $0x7c0] sm:$0xff]
    %v418 = vld [vmem:[#allocation2 + $0x7c8] sm:$0xff]
    %v419 = vld [vmem:[#allocation2 + $0x7d0] sm:$0xff]
    %v420 = vld [vmem:[#allocation2 + $0x7d8] sm:$0xff]
    %v421 = vld [vmem:[#allocation2 + $0x7e0] sm:$0xff]
    %v422 = vld [vmem:[#allocation2 + $0x7e8] sm:$0xff]
    %v423 = vld [vmem:[#allocation2 + $0x7f0] sm:$0xff]
    %v424 = vld [vmem:[#allocation2 + $0x7f8] sm:$0xff]
    %v425 = vld [vmem:[%s1] sm:$0xf]
    %v426 = vld [vmem:[%s1 + $0x4] sm:$0xf]
    %v427 = vld [vmem:[%s1 + $0x8] sm:$0xf]
    %v428 = vld [vmem:[%s1 + $0xc] sm:$0xf]
    %v433 = vcombine.low %v425, %v426
    %v434 = vcombine.low %v427, %v428
    %v436 = vunpack.c.l.s4 1983009808
    %v437 = vunpack.c.0.s8 %v436
    %v438 = vlaneseq
    %v439 = vshrl.u32 %v438, 7
    %v440 = vsub.s32 %v437, %v439
    %v441 = vrot.slane %v433, %v440
    %v443 = vunpack.c.l.s4 1983009808
    %v444 = vunpack.c.0.s8 %v443
    %v445 = vlaneseq
    %v446 = vshrl.u32 %v445, 7
    %v447 = vsub.s32 %v444, %v446
    %v448 = vrot.slane %v434, %v447
    %v449 = vcombine.low %v441, %v448
    %v450 = vcombine.high %v441, %v448
    %v453 = vpack.c.bf16 %v449, %v449
    %v454 = vpack.c.bf16 %v450, %v450
    %v455 = vld [vmem:[#allocation5] sm:$0xff]
    %v456 = vld [vmem:[#allocation5 + $0x8] sm:$0xff]
    %v457 = vld [vmem:[#allocation5 + $0x10] sm:$0xff]
    %v458 = vld [vmem:[#allocation5 + $0x18] sm:$0xff]
    %v459 = vld [vmem:[#allocation5 + $0x20] sm:$0xff]
    %v460 = vld [vmem:[#allocation5 + $0x28] sm:$0xff]
    %v461 = vld [vmem:[#allocation5 + $0x30] sm:$0xff]
    %v462 = vld [vmem:[#allocation5 + $0x38] sm:$0xff]
    %v463 = vld [vmem:[#allocation5 + $0x40] sm:$0xff]
    %v464 = vld [vmem:[#allocation5 + $0x48] sm:$0xff]
    %v465 = vld [vmem:[#allocation5 + $0x50] sm:$0xff]
    %v466 = vld [vmem:[#allocation5 + $0x58] sm:$0xff]
    %v467 = vld [vmem:[#allocation5 + $0x60] sm:$0xff]
    %v468 = vld [vmem:[#allocation5 + $0x68] sm:$0xff]
    %v469 = vld [vmem:[#allocation5 + $0x70] sm:$0xff]
    %v470 = vld [vmem:[#allocation5 + $0x78] sm:$0xff]
    %v471 = vld [vmem:[#allocation5 + $0x80] sm:$0xff]
    %v472 = vld [vmem:[#allocation5 + $0x88] sm:$0xff]
    %v473 = vld [vmem:[#allocation5 + $0x90] sm:$0xff]
    %v474 = vld [vmem:[#allocation5 + $0x98] sm:$0xff]
    %v475 = vld [vmem:[#allocation5 + $0xa0] sm:$0xff]
    %v476 = vld [vmem:[#allocation5 + $0xa8] sm:$0xff]
    %v477 = vld [vmem:[#allocation5 + $0xb0] sm:$0xff]
    %v478 = vld [vmem:[#allocation5 + $0xb8] sm:$0xff]
    %v479 = vld [vmem:[#allocation5 + $0xc0] sm:$0xff]
    %v480 = vld [vmem:[#allocation5 + $0xc8] sm:$0xff]
    %v481 = vld [vmem:[#allocation5 + $0xd0] sm:$0xff]
    %v482 = vld [vmem:[#allocation5 + $0xd8] sm:$0xff]
    %v483 = vld [vmem:[#allocation5 + $0xe0] sm:$0xff]
    %v484 = vld [vmem:[#allocation5 + $0xe8] sm:$0xff]
    %v485 = vld [vmem:[#allocation5 + $0xf0] sm:$0xff]
    %v486 = vld [vmem:[#allocation5 + $0xf8] sm:$0xff]
    %v487 = vld [vmem:[#allocation5 + $0x100] sm:$0xff]
    %v488 = vld [vmem:[#allocation5 + $0x108] sm:$0xff]
    %v489 = vld [vmem:[#allocation5 + $0x110] sm:$0xff]
    %v490 = vld [vmem:[#allocation5 + $0x118] sm:$0xff]
    %v491 = vld [vmem:[#allocation5 + $0x120] sm:$0xff]
    %v492 = vld [vmem:[#allocation5 + $0x128] sm:$0xff]
    %v493 = vld [vmem:[#allocation5 + $0x130] sm:$0xff]
    %v494 = vld [vmem:[#allocation5 + $0x138] sm:$0xff]
    %v495 = vld [vmem:[#allocation5 + $0x140] sm:$0xff]
    %v496 = vld [vmem:[#allocation5 + $0x148] sm:$0xff]
    %v497 = vld [vmem:[#allocation5 + $0x150] sm:$0xff]
    %v498 = vld [vmem:[#allocation5 + $0x158] sm:$0xff]
    %v499 = vld [vmem:[#allocation5 + $0x160] sm:$0xff]
    %v500 = vld [vmem:[#allocation5 + $0x168] sm:$0xff]
    %v501 = vld [vmem:[#allocation5 + $0x170] sm:$0xff]
    %v502 = vld [vmem:[#allocation5 + $0x178] sm:$0xff]
    %v503 = vld [vmem:[#allocation5 + $0x180] sm:$0xff]
    %v504 = vld [vmem:[#allocation5 + $0x188] sm:$0xff]
    %v505 = vld [vmem:[#allocation5 + $0x190] sm:$0xff]
    %v506 = vld [vmem:[#allocation5 + $0x198] sm:$0xff]
    %v507 = vld [vmem:[#allocation5 + $0x1a0] sm:$0xff]
    %v508 = vld [vmem:[#allocation5 + $0x1a8] sm:$0xff]
    %v509 = vld [vmem:[#allocation5 + $0x1b0] sm:$0xff]
    %v510 = vld [vmem:[#allocation5 + $0x1b8] sm:$0xff]
    %v511 = vld [vmem:[#allocation5 + $0x1c0] sm:$0xff]
    %v512 = vld [vmem:[#allocation5 + $0x1c8] sm:$0xff]
    %v513 = vld [vmem:[#allocation5 + $0x1d0] sm:$0xff]
    %v514 = vld [vmem:[#allocation5 + $0x1d8] sm:$0xff]
    %v515 = vld [vmem:[#allocation5 + $0x1e0] sm:$0xff]
    %v516 = vld [vmem:[#allocation5 + $0x1e8] sm:$0xff]
    %v517 = vld [vmem:[#allocation5 + $0x1f0] sm:$0xff]
    %v518 = vld [vmem:[#allocation5 + $0x1f8] sm:$0xff]
    %v583 = vunpack.c.l.b16 %v455
    %v584 = vunpack.c.h.b16 %v455
    %v585 = vunpack.c.l.b16 %v456
    %v586 = vunpack.c.h.b16 %v456
    %v587 = vunpack.c.l.b16 %v457
    %v588 = vunpack.c.h.b16 %v457
    %v589 = vunpack.c.l.b16 %v458
    %v590 = vunpack.c.h.b16 %v458
    %v591 = vunpack.c.l.b16 %v459
    %v592 = vunpack.c.h.b16 %v459
    %v593 = vunpack.c.l.b16 %v460
    %v594 = vunpack.c.h.b16 %v460
    %v595 = vunpack.c.l.b16 %v461
    %v596 = vunpack.c.h.b16 %v461
    %v597 = vunpack.c.l.b16 %v462
    %v598 = vunpack.c.h.b16 %v462
    %v599 = vunpack.c.l.b16 %v463
    %v600 = vunpack.c.h.b16 %v463
    %v601 = vunpack.c.l.b16 %v464
    %v602 = vunpack.c.h.b16 %v464
    %v603 = vunpack.c.l.b16 %v465
    %v604 = vunpack.c.h.b16 %v465
    %v605 = vunpack.c.l.b16 %v466
    %v606 = vunpack.c.h.b16 %v466
    %v607 = vunpack.c.l.b16 %v467
    %v608 = vunpack.c.h.b16 %v467
    %v609 = vunpack.c.l.b16 %v468
    %v610 = vunpack.c.h.b16 %v468
    %v611 = vunpack.c.l.b16 %v469
    %v612 = vunpack.c.h.b16 %v469
    %v613 = vunpack.c.l.b16 %v470
    %v614 = vunpack.c.h.b16 %v470
    %v615 = vunpack.c.l.b16 %v471
    %v616 = vunpack.c.h.b16 %v471
    %v617 = vunpack.c.l.b16 %v472
    %v618 = vunpack.c.h.b16 %v472
    %v619 = vunpack.c.l.b16 %v473
    %v620 = vunpack.c.h.b16 %v473
    %v621 = vunpack.c.l.b16 %v474
    %v622 = vunpack.c.h.b16 %v474
    %v623 = vunpack.c.l.b16 %v475
    %v624 = vunpack.c.h.b16 %v475
    %v625 = vunpack.c.l.b16 %v476
    %v626 = vunpack.c.h.b16 %v476
    %v627 = vunpack.c.l.b16 %v477
    %v628 = vunpack.c.h.b16 %v477
    %v629 = vunpack.c.l.b16 %v478
    %v630 = vunpack.c.h.b16 %v478
    %v631 = vunpack.c.l.b16 %v479
    %v632 = vunpack.c.h.b16 %v479
    %v633 = vunpack.c.l.b16 %v480
    %v634 = vunpack.c.h.b16 %v480
    %v635 = vunpack.c.l.b16 %v481
    %v636 = vunpack.c.h.b16 %v481
    %v637 = vunpack.c.l.b16 %v482
    %v638 = vunpack.c.h.b16 %v482
    %v639 = vunpack.c.l.b16 %v483
    %v640 = vunpack.c.h.b16 %v483
    %v641 = vunpack.c.l.b16 %v484
    %v642 = vunpack.c.h.b16 %v484
    %v643 = vunpack.c.l.b16 %v485
    %v644 = vunpack.c.h.b16 %v485
    %v645 = vunpack.c.l.b16 %v486
    %v646 = vunpack.c.h.b16 %v486
    %v647 = vunpack.c.l.b16 %v487
    %v648 = vunpack.c.h.b16 %v487
    %v649 = vunpack.c.l.b16 %v488
    %v650 = vunpack.c.h.b16 %v488
    %v651 = vunpack.c.l.b16 %v489
    %v652 = vunpack.c.h.b16 %v489
    %v653 = vunpack.c.l.b16 %v490
    %v654 = vunpack.c.h.b16 %v490
    %v655 = vunpack.c.l.b16 %v491
    %v656 = vunpack.c.h.b16 %v491
    %v657 = vunpack.c.l.b16 %v492
    %v658 = vunpack.c.h.b16 %v492
    %v659 = vunpack.c.l.b16 %v493
    %v660 = vunpack.c.h.b16 %v493
    %v661 = vunpack.c.l.b16 %v494
    %v662 = vunpack.c.h.b16 %v494
    %v663 = vunpack.c.l.b16 %v495
    %v664 = vunpack.c.h.b16 %v495
    %v665 = vunpack.c.l.b16 %v496
    %v666 = vunpack.c.h.b16 %v496
    %v667 = vunpack.c.l.b16 %v497
    %v668 = vunpack.c.h.b16 %v497
    %v669 = vunpack.c.l.b16 %v498
    %v670 = vunpack.c.h.b16 %v498
    %v671 = vunpack.c.l.b16 %v499
    %v672 = vunpack.c.h.b16 %v499
    %v673 = vunpack.c.l.b16 %v500
    %v674 = vunpack.c.h.b16 %v500
    %v675 = vunpack.c.l.b16 %v501
    %v676 = vunpack.c.h.b16 %v501
    %v677 = vunpack.c.l.b16 %v502
    %v678 = vunpack.c.h.b16 %v502
    %v679 = vunpack.c.l.b16 %v503
    %v680 = vunpack.c.h.b16 %v503
    %v681 = vunpack.c.l.b16 %v504
    %v682 = vunpack.c.h.b16 %v504
    %v683 = vunpack.c.l.b16 %v505
    %v684 = vunpack.c.h.b16 %v505
    %v685 = vunpack.c.l.b16 %v506
    %v686 = vunpack.c.h.b16 %v506
    %v687 = vunpack.c.l.b16 %v507
    %v688 = vunpack.c.h.b16 %v507
    %v689 = vunpack.c.l.b16 %v508
    %v690 = vunpack.c.h.b16 %v508
    %v691 = vunpack.c.l.b16 %v509
    %v692 = vunpack.c.h.b16 %v509
    %v693 = vunpack.c.l.b16 %v510
    %v694 = vunpack.c.h.b16 %v510
    %v695 = vunpack.c.l.b16 %v511
    %v696 = vunpack.c.h.b16 %v511
    %v697 = vunpack.c.l.b16 %v512
    %v698 = vunpack.c.h.b16 %v512
    %v699 = vunpack.c.l.b16 %v513
    %v700 = vunpack.c.h.b16 %v513
    %v701 = vunpack.c.l.b16 %v514
    %v702 = vunpack.c.h.b16 %v514
    %v703 = vunpack.c.l.b16 %v515
    %v704 = vunpack.c.h.b16 %v515
    %v705 = vunpack.c.l.b16 %v516
    %v706 = vunpack.c.h.b16 %v516
    %v707 = vunpack.c.l.b16 %v517
    %v708 = vunpack.c.h.b16 %v517
    %v709 = vunpack.c.l.b16 %v518
    %v710 = vunpack.c.h.b16 %v518
    %v711 = vpack.c.b16 %v587, %v583
    %v712 = vpack.c.b16 %v588, %v584
    %v713 = vpack.c.b16 %v589, %v585
    %v714 = vpack.c.b16 %v590, %v586
    %v715 = vpack.c.b16 %v595, %v591
    %v716 = vpack.c.b16 %v596, %v592
    %v717 = vpack.c.b16 %v597, %v593
    %v718 = vpack.c.b16 %v598, %v594
    %v719 = vpack.c.b16 %v603, %v599
    %v720 = vpack.c.b16 %v604, %v600
    %v721 = vpack.c.b16 %v605, %v601
    %v722 = vpack.c.b16 %v606, %v602
    %v723 = vpack.c.b16 %v611, %v607
    %v724 = vpack.c.b16 %v612, %v608
    %v725 = vpack.c.b16 %v613, %v609
    %v726 = vpack.c.b16 %v614, %v610
    %v727 = vpack.c.b16 %v619, %v615
    %v728 = vpack.c.b16 %v620, %v616
    %v729 = vpack.c.b16 %v621, %v617
    %v730 = vpack.c.b16 %v622, %v618
    %v731 = vpack.c.b16 %v627, %v623
    %v732 = vpack.c.b16 %v628, %v624
    %v733 = vpack.c.b16 %v629, %v625
    %v734 = vpack.c.b16 %v630, %v626
    %v735 = vpack.c.b16 %v635, %v631
    %v736 = vpack.c.b16 %v636, %v632
    %v737 = vpack.c.b16 %v637, %v633
    %v738 = vpack.c.b16 %v638, %v634
    %v739 = vpack.c.b16 %v643, %v639
    %v740 = vpack.c.b16 %v644, %v640
    %v741 = vpack.c.b16 %v645, %v641
    %v742 = vpack.c.b16 %v646, %v642
    %v743 = vpack.c.b16 %v651, %v647
    %v744 = vpack.c.b16 %v652, %v648
    %v745 = vpack.c.b16 %v653, %v649
    %v746 = vpack.c.b16 %v654, %v650
    %v747 = vpack.c.b16 %v659, %v655
    %v748 = vpack.c.b16 %v660, %v656
    %v749 = vpack.c.b16 %v661, %v657
    %v750 = vpack.c.b16 %v662, %v658
    %v751 = vpack.c.b16 %v667, %v663
    %v752 = vpack.c.b16 %v668, %v664
    %v753 = vpack.c.b16 %v669, %v665
    %v754 = vpack.c.b16 %v670, %v666
    %v755 = vpack.c.b16 %v675, %v671
    %v756 = vpack.c.b16 %v676, %v672
    %v757 = vpack.c.b16 %v677, %v673
    %v758 = vpack.c.b16 %v678, %v674
    %v759 = vpack.c.b16 %v683, %v679
    %v760 = vpack.c.b16 %v684, %v680
    %v761 = vpack.c.b16 %v685, %v681
    %v762 = vpack.c.b16 %v686, %v682
    %v763 = vpack.c.b16 %v691, %v687
    %v764 = vpack.c.b16 %v692, %v688
    %v765 = vpack.c.b16 %v693, %v689
    %v766 = vpack.c.b16 %v694, %v690
    %v767 = vpack.c.b16 %v699, %v695
    %v768 = vpack.c.b16 %v700, %v696
    %v769 = vpack.c.b16 %v701, %v697
    %v770 = vpack.c.b16 %v702, %v698
    %v771 = vpack.c.b16 %v707, %v703
    %v772 = vpack.c.b16 %v708, %v704
    %v773 = vpack.c.b16 %v709, %v705
    %v774 = vpack.c.b16 %v710, %v706
    %839 = vmatprep.subr.bf16.mxu0 %v712
    %840 = vmatpush1.bf16.msra.mxu0 %v711
    %841 = vmatprep.subr.bf16.mxu0 %v716
    %842 = vmatpush1.bf16.msra.mxu0 %v715
    %843 = vmatprep.subr.bf16.mxu0 %v720
    %844 = vmatpush1.bf16.msra.mxu0 %v719
    %845 = vmatprep.subr.bf16.mxu0 %v724
    %846 = vmatpush1.bf16.msra.mxu0 %v723
    %847 = vmatprep.subr.bf16.mxu0 %v728
    %848 = vmatpush1.bf16.msra.mxu0 %v727
    %849 = vmatprep.subr.bf16.mxu0 %v732
    %850 = vmatpush1.bf16.msra.mxu0 %v731
    %851 = vmatprep.subr.bf16.mxu0 %v736
    %852 = vmatpush1.bf16.msra.mxu0 %v735
    %853 = vmatprep.subr.bf16.mxu0 %v740
    %854 = vmatpush1.bf16.msra.mxu0 %v739
    %855 = vmatprep.subr.bf16.mxu0 %v744
    %856 = vmatpush1.bf16.msra.mxu0 %v743
    %857 = vmatprep.subr.bf16.mxu0 %v748
    %858 = vmatpush1.bf16.msra.mxu0 %v747
    %859 = vmatprep.subr.bf16.mxu0 %v752
    %860 = vmatpush1.bf16.msra.mxu0 %v751
    %861 = vmatprep.subr.bf16.mxu0 %v756
    %862 = vmatpush1.bf16.msra.mxu0 %v755
    %863 = vmatprep.subr.bf16.mxu0 %v760
    %864 = vmatpush1.bf16.msra.mxu0 %v759
    %865 = vmatprep.subr.bf16.mxu0 %v764
    %866 = vmatpush1.bf16.msra.mxu0 %v763
    %867 = vmatprep.subr.bf16.mxu0 %v768
    %868 = vmatpush1.bf16.msra.mxu0 %v767
    %869 = vmatprep.subr.bf16.mxu0 %v772
    %870 = vmatpush1.bf16.msra.mxu0 %v771
    %871 = vmatprep.mubr.bf16.mxu0 %v454
    %872 = vmatmul.mubr.bf16.gmra.mrb[0].mxu0 %v453
    %v873 = vpop.f32.mrb[0].mxu0
    %v874 = vadd.f32 0.0, %v873
    %v875 = vpop.f32.mrb[0].mxu0
    %v876 = vadd.f32 0.0, %v875
    %v877 = vpop.f32.mrb[0].mxu0
    %v878 = vpop.f32.mrb[0].mxu0
    %879 = vdwg.mxu0
    %880 = vmatprep.subr.bf16.mxu0 %v714
    %881 = vmatpush1.bf16.msra.mxu0 %v713
    %882 = vmatprep.subr.bf16.mxu0 %v718
    %883 = vmatpush1.bf16.msra.mxu0 %v717
    %884 = vmatprep.subr.bf16.mxu0 %v722
    %885 = vmatpush1.bf16.msra.mxu0 %v721
    %886 = vmatprep.subr.bf16.mxu0 %v726
    %887 = vmatpush1.bf16.msra.mxu0 %v725
    %888 = vmatprep.subr.bf16.mxu0 %v730
    %889 = vmatpush1.bf16.msra.mxu0 %v729
    %890 = vmatprep.subr.bf16.mxu0 %v734
    %891 = vmatpush1.bf16.msra.mxu0 %v733
    %892 = vmatprep.subr.bf16.mxu0 %v738
    %893 = vmatpush1.bf16.msra.mxu0 %v737
    %894 = vmatprep.subr.bf16.mxu0 %v742
    %895 = vmatpush1.bf16.msra.mxu0 %v741
    %896 = vmatprep.subr.bf16.mxu0 %v746
    %897 = vmatpush1.bf16.msra.mxu0 %v745
    %898 = vmatprep.subr.bf16.mxu0 %v750
    %899 = vmatpush1.bf16.msra.mxu0 %v749
    %900 = vmatprep.subr.bf16.mxu0 %v754
    %901 = vmatpush1.bf16.msra.mxu0 %v753
    %902 = vmatprep.subr.bf16.mxu0 %v758
    %903 = vmatpush1.bf16.msra.mxu0 %v757
    %904 = vmatprep.subr.bf16.mxu0 %v762
    %905 = vmatpush1.bf16.msra.mxu0 %v761
    %906 = vmatprep.subr.bf16.mxu0 %v766
    %907 = vmatpush1.bf16.msra.mxu0 %v765
    %908 = vmatprep.subr.bf16.mxu0 %v770
    %909 = vmatpush1.bf16.msra.mxu0 %v769
    %910 = vmatprep.subr.bf16.mxu0 %v774
    %911 = vmatpush1.bf16.msra.mxu0 %v773
    %912 = vmatprep.mubr.bf16.mxu0 %v454
    %913 = vmatmul.mubr.bf16.gmra.mrb[0].mxu0 %v453
    %v914 = vpop.f32.mrb[0].mxu0
    %v915 = vadd.f32 0.0, %v914
    %v916 = vpop.f32.mrb[0].mxu0
    %v917 = vadd.f32 0.0, %v916
    %v918 = vpop.f32.mrb[0].mxu0
    %v919 = vpop.f32.mrb[0].mxu0
    %920 = vdwg.mxu0
    %v1177 = vunpack.c.l.b16 %v169
    %v1178 = vunpack.c.h.b16 %v169
    %v1179 = vunpack.c.l.b16 %v170
    %v1180 = vunpack.c.h.b16 %v170
    %v1181 = vunpack.c.l.b16 %v171
    %v1182 = vunpack.c.h.b16 %v171
    %v1183 = vunpack.c.l.b16 %v172
    %v1184 = vunpack.c.h.b16 %v172
    %v1185 = vunpack.c.l.b16 %v173
    %v1186 = vunpack.c.h.b16 %v173
    %v1187 = vunpack.c.l.b16 %v174
    %v1188 = vunpack.c.h.b16 %v174
    %v1189 = vunpack.c.l.b16 %v175
    %v1190 = vunpack.c.h.b16 %v175
    %v1191 = vunpack.c.l.b16 %v176
    %v1192 = vunpack.c.h.b16 %v176
    %v1193 = vunpack.c.l.b16 %v177
    %v1194 = vunpack.c.h.b16 %v177
    %v1195 = vunpack.c.l.b16 %v178
    %v1196 = vunpack.c.h.b16 %v178
    %v1197 = vunpack.c.l.b16 %v179
    %v1198 = vunpack.c.h.b16 %v179
    %v1199 = vunpack.c.l.b16 %v180
    %v1200 = vunpack.c.h.b16 %v180
    %v1201 = vunpack.c.l.b16 %v181
    %v1202 = vunpack.c.h.b16 %v181
    %v1203 = vunpack.c.l.b16 %v182
    %v1204 = vunpack.c.h.b16 %v182
    %v1205 = vunpack.c.l.b16 %v183
    %v1206 = vunpack.c.h.b16 %v183
    %v1207 = vunpack.c.l.b16 %v184
    %v1208 = vunpack.c.h.b16 %v184
    %v1209 = vunpack.c.l.b16 %v185
    %v1210 = vunpack.c.h.b16 %v185
    %v1211 = vunpack.c.l.b16 %v186
    %v1212 = vunpack.c.h.b16 %v186
    %v1213 = vunpack.c.l.b16 %v187
    %v1214 = vunpack.c.h.b16 %v187
    %v1215 = vunpack.c.l.b16 %v188
    %v1216 = vunpack.c.h.b16 %v188
    %v1217 = vunpack.c.l.b16 %v189
    %v1218 = vunpack.c.h.b16 %v189
    %v1219 = vunpack.c.l.b16 %v190
    %v1220 = vunpack.c.h.b16 %v190
    %v1221 = vunpack.c.l.b16 %v191
    %v1222 = vunpack.c.h.b16 %v191
    %v1223 = vunpack.c.l.b16 %v192
    %v1224 = vunpack.c.h.b16 %v192
    %v1225 = vunpack.c.l.b16 %v193
    %v1226 = vunpack.c.h.b16 %v193
    %v1227 = vunpack.c.l.b16 %v194
    %v1228 = vunpack.c.h.b16 %v194
    %v1229 = vunpack.c.l.b16 %v195
    %v1230 = vunpack.c.h.b16 %v195
    %v1231 = vunpack.c.l.b16 %v196
    %v1232 = vunpack.c.h.b16 %v196
    %v1233 = vunpack.c.l.b16 %v197
    %v1234 = vunpack.c.h.b16 %v197
    %v1235 = vunpack.c.l.b16 %v198
    %v1236 = vunpack.c.h.b16 %v198
    %v1237 = vunpack.c.l.b16 %v199
    %v1238 = vunpack.c.h.b16 %v199
    %v1239 = vunpack.c.l.b16 %v200
    %v1240 = vunpack.c.h.b16 %v200
    %v1241 = vunpack.c.l.b16 %v201
    %v1242 = vunpack.c.h.b16 %v201
    %v1243 = vunpack.c.l.b16 %v202
    %v1244 = vunpack.c.h.b16 %v202
    %v1245 = vunpack.c.l.b16 %v203
    %v1246 = vunpack.c.h.b16 %v203
    %v1247 = vunpack.c.l.b16 %v204
    %v1248 = vunpack.c.h.b16 %v204
    %v1249 = vunpack.c.l.b16 %v205
    %v1250 = vunpack.c.h.b16 %v205
    %v1251 = vunpack.c.l.b16 %v206
    %v1252 = vunpack.c.h.b16 %v206
    %v1253 = vunpack.c.l.b16 %v207
    %v1254 = vunpack.c.h.b16 %v207
    %v1255 = vunpack.c.l.b16 %v208
    %v1256 = vunpack.c.h.b16 %v208
    %v1257 = vunpack.c.l.b16 %v209
    %v1258 = vunpack.c.h.b16 %v209
    %v1259 = vunpack.c.l.b16 %v210
    %v1260 = vunpack.c.h.b16 %v210
    %v1261 = vunpack.c.l.b16 %v211
    %v1262 = vunpack.c.h.b16 %v211
    %v1263 = vunpack.c.l.b16 %v212
    %v1264 = vunpack.c.h.b16 %v212
    %v1265 = vunpack.c.l.b16 %v213
    %v1266 = vunpack.c.h.b16 %v213
    %v1267 = vunpack.c.l.b16 %v214
    %v1268 = vunpack.c.h.b16 %v214
    %v1269 = vunpack.c.l.b16 %v215
    %v1270 = vunpack.c.h.b16 %v215
    %v1271 = vunpack.c.l.b16 %v216
    %v1272 = vunpack.c.h.b16 %v216
    %v1273 = vunpack.c.l.b16 %v217
    %v1274 = vunpack.c.h.b16 %v217
    %v1275 = vunpack.c.l.b16 %v218
    %v1276 = vunpack.c.h.b16 %v218
    %v1277 = vunpack.c.l.b16 %v219
    %v1278 = vunpack.c.h.b16 %v219
    %v1279 = vunpack.c.l.b16 %v220
    %v1280 = vunpack.c.h.b16 %v220
    %v1281 = vunpack.c.l.b16 %v221
    %v1282 = vunpack.c.h.b16 %v221
    %v1283 = vunpack.c.l.b16 %v222
    %v1284 = vunpack.c.h.b16 %v222
    %v1285 = vunpack.c.l.b16 %v223
    %v1286 = vunpack.c.h.b16 %v223
    %v1287 = vunpack.c.l.b16 %v224
    %v1288 = vunpack.c.h.b16 %v224
    %v1289 = vunpack.c.l.b16 %v225
    %v1290 = vunpack.c.h.b16 %v225
    %v1291 = vunpack.c.l.b16 %v226
    %v1292 = vunpack.c.h.b16 %v226
    %v1293 = vunpack.c.l.b16 %v227
    %v1294 = vunpack.c.h.b16 %v227
    %v1295 = vunpack.c.l.b16 %v228
    %v1296 = vunpack.c.h.b16 %v228
    %v1297 = vunpack.c.l.b16 %v229
    %v1298 = vunpack.c.h.b16 %v229
    %v1299 = vunpack.c.l.b16 %v230
    %v1300 = vunpack.c.h.b16 %v230
    %v1301 = vunpack.c.l.b16 %v231
    %v1302 = vunpack.c.h.b16 %v231
    %v1303 = vunpack.c.l.b16 %v232
    %v1304 = vunpack.c.h.b16 %v232
    %v1305 = vunpack.c.l.b16 %v233
    %v1306 = vunpack.c.h.b16 %v233
    %v1307 = vunpack.c.l.b16 %v234
    %v1308 = vunpack.c.h.b16 %v234
    %v1309 = vunpack.c.l.b16 %v235
    %v1310 = vunpack.c.h.b16 %v235
    %v1311 = vunpack.c.l.b16 %v236
    %v1312 = vunpack.c.h.b16 %v236
    %v1313 = vunpack.c.l.b16 %v237
    %v1314 = vunpack.c.h.b16 %v237
    %v1315 = vunpack.c.l.b16 %v238
    %v1316 = vunpack.c.h.b16 %v238
    %v1317 = vunpack.c.l.b16 %v239
    %v1318 = vunpack.c.h.b16 %v239
    %v1319 = vunpack.c.l.b16 %v240
    %v1320 = vunpack.c.h.b16 %v240
    %v1321 = vunpack.c.l.b16 %v241
    %v1322 = vunpack.c.h.b16 %v241
    %v1323 = vunpack.c.l.b16 %v242
    %v1324 = vunpack.c.h.b16 %v242
    %v1325 = vunpack.c.l.b16 %v243
    %v1326 = vunpack.c.h.b16 %v243
    %v1327 = vunpack.c.l.b16 %v244
    %v1328 = vunpack.c.h.b16 %v244
    %v1329 = vunpack.c.l.b16 %v245
    %v1330 = vunpack.c.h.b16 %v245
    %v1331 = vunpack.c.l.b16 %v246
    %v1332 = vunpack.c.h.b16 %v246
    %v1333 = vunpack.c.l.b16 %v247
    %v1334 = vunpack.c.h.b16 %v247
    %v1335 = vunpack.c.l.b16 %v248
    %v1336 = vunpack.c.h.b16 %v248
    %v1337 = vunpack.c.l.b16 %v249
    %v1338 = vunpack.c.h.b16 %v249
    %v1339 = vunpack.c.l.b16 %v250
    %v1340 = vunpack.c.h.b16 %v250
    %v1341 = vunpack.c.l.b16 %v251
    %v1342 = vunpack.c.h.b16 %v251
    %v1343 = vunpack.c.l.b16 %v252
    %v1344 = vunpack.c.h.b16 %v252
    %v1345 = vunpack.c.l.b16 %v253
    %v1346 = vunpack.c.h.b16 %v253
    %v1347 = vunpack.c.l.b16 %v254
    %v1348 = vunpack.c.h.b16 %v254
    %v1349 = vunpack.c.l.b16 %v255
    %v1350 = vunpack.c.h.b16 %v255
    %v1351 = vunpack.c.l.b16 %v256
    %v1352 = vunpack.c.h.b16 %v256
    %v1353 = vunpack.c.l.b16 %v257
    %v1354 = vunpack.c.h.b16 %v257
    %v1355 = vunpack.c.l.b16 %v258
    %v1356 = vunpack.c.h.b16 %v258
    %v1357 = vunpack.c.l.b16 %v259
    %v1358 = vunpack.c.h.b16 %v259
    %v1359 = vunpack.c.l.b16 %v260
    %v1360 = vunpack.c.h.b16 %v260
    %v1361 = vunpack.c.l.b16 %v261
    %v1362 = vunpack.c.h.b16 %v261
    %v1363 = vunpack.c.l.b16 %v262
    %v1364 = vunpack.c.h.b16 %v262
    %v1365 = vunpack.c.l.b16 %v263
    %v1366 = vunpack.c.h.b16 %v263
    %v1367 = vunpack.c.l.b16 %v264
    %v1368 = vunpack.c.h.b16 %v264
    %v1369 = vunpack.c.l.b16 %v265
    %v1370 = vunpack.c.h.b16 %v265
    %v1371 = vunpack.c.l.b16 %v266
    %v1372 = vunpack.c.h.b16 %v266
    %v1373 = vunpack.c.l.b16 %v267
    %v1374 = vunpack.c.h.b16 %v267
    %v1375 = vunpack.c.l.b16 %v268
    %v1376 = vunpack.c.h.b16 %v268
    %v1377 = vunpack.c.l.b16 %v269
    %v1378 = vunpack.c.h.b16 %v269
    %v1379 = vunpack.c.l.b16 %v270
    %v1380 = vunpack.c.h.b16 %v270
    %v1381 = vunpack.c.l.b16 %v271
    %v1382 = vunpack.c.h.b16 %v271
    %v1383 = vunpack.c.l.b16 %v272
    %v1384 = vunpack.c.h.b16 %v272
    %v1385 = vunpack.c.l.b16 %v273
    %v1386 = vunpack.c.h.b16 %v273
    %v1387 = vunpack.c.l.b16 %v274
    %v1388 = vunpack.c.h.b16 %v274
    %v1389 = vunpack.c.l.b16 %v275
    %v1390 = vunpack.c.h.b16 %v275
    %v1391 = vunpack.c.l.b16 %v276
    %v1392 = vunpack.c.h.b16 %v276
    %v1393 = vunpack.c.l.b16 %v277
    %v1394 = vunpack.c.h.b16 %v277
    %v1395 = vunpack.c.l.b16 %v278
    %v1396 = vunpack.c.h.b16 %v278
    %v1397 = vunpack.c.l.b16 %v279
    %v1398 = vunpack.c.h.b16 %v279
    %v1399 = vunpack.c.l.b16 %v280
    %v1400 = vunpack.c.h.b16 %v280
    %v1401 = vunpack.c.l.b16 %v281
    %v1402 = vunpack.c.h.b16 %v281
    %v1403 = vunpack.c.l.b16 %v282
    %v1404 = vunpack.c.h.b16 %v282
    %v1405 = vunpack.c.l.b16 %v283
    %v1406 = vunpack.c.h.b16 %v283
    %v1407 = vunpack.c.l.b16 %v284
    %v1408 = vunpack.c.h.b16 %v284
    %v1409 = vunpack.c.l.b16 %v285
    %v1410 = vunpack.c.h.b16 %v285
    %v1411 = vunpack.c.l.b16 %v286
    %v1412 = vunpack.c.h.b16 %v286
    %v1413 = vunpack.c.l.b16 %v287
    %v1414 = vunpack.c.h.b16 %v287
    %v1415 = vunpack.c.l.b16 %v288
    %v1416 = vunpack.c.h.b16 %v288
    %v1417 = vunpack.c.l.b16 %v289
    %v1418 = vunpack.c.h.b16 %v289
    %v1419 = vunpack.c.l.b16 %v290
    %v1420 = vunpack.c.h.b16 %v290
    %v1421 = vunpack.c.l.b16 %v291
    %v1422 = vunpack.c.h.b16 %v291
    %v1423 = vunpack.c.l.b16 %v292
    %v1424 = vunpack.c.h.b16 %v292
    %v1425 = vunpack.c.l.b16 %v293
    %v1426 = vunpack.c.h.b16 %v293
    %v1427 = vunpack.c.l.b16 %v294
    %v1428 = vunpack.c.h.b16 %v294
    %v1429 = vunpack.c.l.b16 %v295
    %v1430 = vunpack.c.h.b16 %v295
    %v1431 = vunpack.c.l.b16 %v296
    %v1432 = vunpack.c.h.b16 %v296
    %v1433 = vunpack.c.l.b16 %v297
    %v1434 = vunpack.c.h.b16 %v297
    %v1435 = vunpack.c.l.b16 %v298
    %v1436 = vunpack.c.h.b16 %v298
    %v1437 = vunpack.c.l.b16 %v299
    %v1438 = vunpack.c.h.b16 %v299
    %v1439 = vunpack.c.l.b16 %v300
    %v1440 = vunpack.c.h.b16 %v300
    %v1441 = vunpack.c.l.b16 %v301
    %v1442 = vunpack.c.h.b16 %v301
    %v1443 = vunpack.c.l.b16 %v302
    %v1444 = vunpack.c.h.b16 %v302
    %v1445 = vunpack.c.l.b16 %v303
    %v1446 = vunpack.c.h.b16 %v303
    %v1447 = vunpack.c.l.b16 %v304
    %v1448 = vunpack.c.h.b16 %v304
    %v1449 = vunpack.c.l.b16 %v305
    %v1450 = vunpack.c.h.b16 %v305
    %v1451 = vunpack.c.l.b16 %v306
    %v1452 = vunpack.c.h.b16 %v306
    %v1453 = vunpack.c.l.b16 %v307
    %v1454 = vunpack.c.h.b16 %v307
    %v1455 = vunpack.c.l.b16 %v308
    %v1456 = vunpack.c.h.b16 %v308
    %v1457 = vunpack.c.l.b16 %v309
    %v1458 = vunpack.c.h.b16 %v309
    %v1459 = vunpack.c.l.b16 %v310
    %v1460 = vunpack.c.h.b16 %v310
    %v1461 = vunpack.c.l.b16 %v311
    %v1462 = vunpack.c.h.b16 %v311
    %v1463 = vunpack.c.l.b16 %v312
    %v1464 = vunpack.c.h.b16 %v312
    %v1465 = vunpack.c.l.b16 %v313
    %v1466 = vunpack.c.h.b16 %v313
    %v1467 = vunpack.c.l.b16 %v314
    %v1468 = vunpack.c.h.b16 %v314
    %v1469 = vunpack.c.l.b16 %v315
    %v1470 = vunpack.c.h.b16 %v315
    %v1471 = vunpack.c.l.b16 %v316
    %v1472 = vunpack.c.h.b16 %v316
    %v1473 = vunpack.c.l.b16 %v317
    %v1474 = vunpack.c.h.b16 %v317
    %v1475 = vunpack.c.l.b16 %v318
    %v1476 = vunpack.c.h.b16 %v318
    %v1477 = vunpack.c.l.b16 %v319
    %v1478 = vunpack.c.h.b16 %v319
    %v1479 = vunpack.c.l.b16 %v320
    %v1480 = vunpack.c.h.b16 %v320
    %v1481 = vunpack.c.l.b16 %v321
    %v1482 = vunpack.c.h.b16 %v321
    %v1483 = vunpack.c.l.b16 %v322
    %v1484 = vunpack.c.h.b16 %v322
    %v1485 = vunpack.c.l.b16 %v323
    %v1486 = vunpack.c.h.b16 %v323
    %v1487 = vunpack.c.l.b16 %v324
    %v1488 = vunpack.c.h.b16 %v324
    %v1489 = vunpack.c.l.b16 %v325
    %v1490 = vunpack.c.h.b16 %v325
    %v1491 = vunpack.c.l.b16 %v326
    %v1492 = vunpack.c.h.b16 %v326
    %v1493 = vunpack.c.l.b16 %v327
    %v1494 = vunpack.c.h.b16 %v327
    %v1495 = vunpack.c.l.b16 %v328
    %v1496 = vunpack.c.h.b16 %v328
    %v1497 = vunpack.c.l.b16 %v329
    %v1498 = vunpack.c.h.b16 %v329
    %v1499 = vunpack.c.l.b16 %v330
    %v1500 = vunpack.c.h.b16 %v330
    %v1501 = vunpack.c.l.b16 %v331
    %v1502 = vunpack.c.h.b16 %v331
    %v1503 = vunpack.c.l.b16 %v332
    %v1504 = vunpack.c.h.b16 %v332
    %v1505 = vunpack.c.l.b16 %v333
    %v1506 = vunpack.c.h.b16 %v333
    %v1507 = vunpack.c.l.b16 %v334
    %v1508 = vunpack.c.h.b16 %v334
    %v1509 = vunpack.c.l.b16 %v335
    %v1510 = vunpack.c.h.b16 %v335
    %v1511 = vunpack.c.l.b16 %v336
    %v1512 = vunpack.c.h.b16 %v336
    %v1513 = vunpack.c.l.b16 %v337
    %v1514 = vunpack.c.h.b16 %v337
    %v1515 = vunpack.c.l.b16 %v338
    %v1516 = vunpack.c.h.b16 %v338
    %v1517 = vunpack.c.l.b16 %v339
    %v1518 = vunpack.c.h.b16 %v339
    %v1519 = vunpack.c.l.b16 %v340
    %v1520 = vunpack.c.h.b16 %v340
    %v1521 = vunpack.c.l.b16 %v341
    %v1522 = vunpack.c.h.b16 %v341
    %v1523 = vunpack.c.l.b16 %v342
    %v1524 = vunpack.c.h.b16 %v342
    %v1525 = vunpack.c.l.b16 %v343
    %v1526 = vunpack.c.h.b16 %v343
    %v1527 = vunpack.c.l.b16 %v344
    %v1528 = vunpack.c.h.b16 %v344
    %v1529 = vunpack.c.l.b16 %v345
    %v1530 = vunpack.c.h.b16 %v345
    %v1531 = vunpack.c.l.b16 %v346
    %v1532 = vunpack.c.h.b16 %v346
    %v1533 = vunpack.c.l.b16 %v347
    %v1534 = vunpack.c.h.b16 %v347
    %v1535 = vunpack.c.l.b16 %v348
    %v1536 = vunpack.c.h.b16 %v348
    %v1537 = vunpack.c.l.b16 %v349
    %v1538 = vunpack.c.h.b16 %v349
    %v1539 = vunpack.c.l.b16 %v350
    %v1540 = vunpack.c.h.b16 %v350
    %v1541 = vunpack.c.l.b16 %v351
    %v1542 = vunpack.c.h.b16 %v351
    %v1543 = vunpack.c.l.b16 %v352
    %v1544 = vunpack.c.h.b16 %v352
    %v1545 = vunpack.c.l.b16 %v353
    %v1546 = vunpack.c.h.b16 %v353
    %v1547 = vunpack.c.l.b16 %v354
    %v1548 = vunpack.c.h.b16 %v354
    %v1549 = vunpack.c.l.b16 %v355
    %v1550 = vunpack.c.h.b16 %v355
    %v1551 = vunpack.c.l.b16 %v356
    %v1552 = vunpack.c.h.b16 %v356
    %v1553 = vunpack.c.l.b16 %v357
    %v1554 = vunpack.c.h.b16 %v357
    %v1555 = vunpack.c.l.b16 %v358
    %v1556 = vunpack.c.h.b16 %v358
    %v1557 = vunpack.c.l.b16 %v359
    %v1558 = vunpack.c.h.b16 %v359
    %v1559 = vunpack.c.l.b16 %v360
    %v1560 = vunpack.c.h.b16 %v360
    %v1561 = vunpack.c.l.b16 %v361
    %v1562 = vunpack.c.h.b16 %v361
    %v1563 = vunpack.c.l.b16 %v362
    %v1564 = vunpack.c.h.b16 %v362
    %v1565 = vunpack.c.l.b16 %v363
    %v1566 = vunpack.c.h.b16 %v363
    %v1567 = vunpack.c.l.b16 %v364
    %v1568 = vunpack.c.h.b16 %v364
    %v1569 = vunpack.c.l.b16 %v365
    %v1570 = vunpack.c.h.b16 %v365
    %v1571 = vunpack.c.l.b16 %v366
    %v1572 = vunpack.c.h.b16 %v366
    %v1573 = vunpack.c.l.b16 %v367
    %v1574 = vunpack.c.h.b16 %v367
    %v1575 = vunpack.c.l.b16 %v368
    %v1576 = vunpack.c.h.b16 %v368
    %v1577 = vunpack.c.l.b16 %v369
    %v1578 = vunpack.c.h.b16 %v369
    %v1579 = vunpack.c.l.b16 %v370
    %v1580 = vunpack.c.h.b16 %v370
    %v1581 = vunpack.c.l.b16 %v371
    %v1582 = vunpack.c.h.b16 %v371
    %v1583 = vunpack.c.l.b16 %v372
    %v1584 = vunpack.c.h.b16 %v372
    %v1585 = vunpack.c.l.b16 %v373
    %v1586 = vunpack.c.h.b16 %v373
    %v1587 = vunpack.c.l.b16 %v374
    %v1588 = vunpack.c.h.b16 %v374
    %v1589 = vunpack.c.l.b16 %v375
    %v1590 = vunpack.c.h.b16 %v375
    %v1591 = vunpack.c.l.b16 %v376
    %v1592 = vunpack.c.h.b16 %v376
    %v1593 = vunpack.c.l.b16 %v377
    %v1594 = vunpack.c.h.b16 %v377
    %v1595 = vunpack.c.l.b16 %v378
    %v1596 = vunpack.c.h.b16 %v378
    %v1597 = vunpack.c.l.b16 %v379
    %v1598 = vunpack.c.h.b16 %v379
    %v1599 = vunpack.c.l.b16 %v380
    %v1600 = vunpack.c.h.b16 %v380
    %v1601 = vunpack.c.l.b16 %v381
    %v1602 = vunpack.c.h.b16 %v381
    %v1603 = vunpack.c.l.b16 %v382
    %v1604 = vunpack.c.h.b16 %v382
    %v1605 = vunpack.c.l.b16 %v383
    %v1606 = vunpack.c.h.b16 %v383
    %v1607 = vunpack.c.l.b16 %v384
    %v1608 = vunpack.c.h.b16 %v384
    %v1609 = vunpack.c.l.b16 %v385
    %v1610 = vunpack.c.h.b16 %v385
    %v1611 = vunpack.c.l.b16 %v386
    %v1612 = vunpack.c.h.b16 %v386
    %v1613 = vunpack.c.l.b16 %v387
    %v1614 = vunpack.c.h.b16 %v387
    %v1615 = vunpack.c.l.b16 %v388
    %v1616 = vunpack.c.h.b16 %v388
    %v1617 = vunpack.c.l.b16 %v389
    %v1618 = vunpack.c.h.b16 %v389
    %v1619 = vunpack.c.l.b16 %v390
    %v1620 = vunpack.c.h.b16 %v390
    %v1621 = vunpack.c.l.b16 %v391
    %v1622 = vunpack.c.h.b16 %v391
    %v1623 = vunpack.c.l.b16 %v392
    %v1624 = vunpack.c.h.b16 %v392
    %v1625 = vunpack.c.l.b16 %v393
    %v1626 = vunpack.c.h.b16 %v393
    %v1627 = vunpack.c.l.b16 %v394
    %v1628 = vunpack.c.h.b16 %v394
    %v1629 = vunpack.c.l.b16 %v395
    %v1630 = vunpack.c.h.b16 %v395
    %v1631 = vunpack.c.l.b16 %v396
    %v1632 = vunpack.c.h.b16 %v396
    %v1633 = vunpack.c.l.b16 %v397
    %v1634 = vunpack.c.h.b16 %v397
    %v1635 = vunpack.c.l.b16 %v398
    %v1636 = vunpack.c.h.b16 %v398
    %v1637 = vunpack.c.l.b16 %v399
    %v1638 = vunpack.c.h.b16 %v399
    %v1639 = vunpack.c.l.b16 %v400
    %v1640 = vunpack.c.h.b16 %v400
    %v1641 = vunpack.c.l.b16 %v401
    %v1642 = vunpack.c.h.b16 %v401
    %v1643 = vunpack.c.l.b16 %v402
    %v1644 = vunpack.c.h.b16 %v402
    %v1645 = vunpack.c.l.b16 %v403
    %v1646 = vunpack.c.h.b16 %v403
    %v1647 = vunpack.c.l.b16 %v404
    %v1648 = vunpack.c.h.b16 %v404
    %v1649 = vunpack.c.l.b16 %v405
    %v1650 = vunpack.c.h.b16 %v405
    %v1651 = vunpack.c.l.b16 %v406
    %v1652 = vunpack.c.h.b16 %v406
    %v1653 = vunpack.c.l.b16 %v407
    %v1654 = vunpack.c.h.b16 %v407
    %v1655 = vunpack.c.l.b16 %v408
    %v1656 = vunpack.c.h.b16 %v408
    %v1657 = vunpack.c.l.b16 %v409
    %v1658 = vunpack.c.h.b16 %v409
    %v1659 = vunpack.c.l.b16 %v410
    %v1660 = vunpack.c.h.b16 %v410
    %v1661 = vunpack.c.l.b16 %v411
    %v1662 = vunpack.c.h.b16 %v411
    %v1663 = vunpack.c.l.b16 %v412
    %v1664 = vunpack.c.h.b16 %v412
    %v1665 = vunpack.c.l.b16 %v413
    %v1666 = vunpack.c.h.b16 %v413
    %v1667 = vunpack.c.l.b16 %v414
    %v1668 = vunpack.c.h.b16 %v414
    %v1669 = vunpack.c.l.b16 %v415
    %v1670 = vunpack.c.h.b16 %v415
    %v1671 = vunpack.c.l.b16 %v416
    %v1672 = vunpack.c.h.b16 %v416
    %v1673 = vunpack.c.l.b16 %v417
    %v1674 = vunpack.c.h.b16 %v417
    %v1675 = vunpack.c.l.b16 %v418
    %v1676 = vunpack.c.h.b16 %v418
    %v1677 = vunpack.c.l.b16 %v419
    %v1678 = vunpack.c.h.b16 %v419
    %v1679 = vunpack.c.l.b16 %v420
    %v1680 = vunpack.c.h.b16 %v420
    %v1681 = vunpack.c.l.b16 %v421
    %v1682 = vunpack.c.h.b16 %v421
    %v1683 = vunpack.c.l.b16 %v422
    %v1684 = vunpack.c.h.b16 %v422
    %v1685 = vunpack.c.l.b16 %v423
    %v1686 = vunpack.c.h.b16 %v423
    %v1687 = vunpack.c.l.b16 %v424
    %v1688 = vunpack.c.h.b16 %v424
    %v1689 = vpack.c.b16 %v1181, %v1177
    %v1690 = vpack.c.b16 %v1182, %v1178
    %v1691 = vpack.c.b16 %v1183, %v1179
    %v1692 = vpack.c.b16 %v1184, %v1180
    %v1693 = vpack.c.b16 %v1189, %v1185
    %v1694 = vpack.c.b16 %v1190, %v1186
    %v1695 = vpack.c.b16 %v1191, %v1187
    %v1696 = vpack.c.b16 %v1192, %v1188
    %v1697 = vpack.c.b16 %v1197, %v1193
    %v1698 = vpack.c.b16 %v1198, %v1194
    %v1699 = vpack.c.b16 %v1199, %v1195
    %v1700 = vpack.c.b16 %v1200, %v1196
    %v1701 = vpack.c.b16 %v1205, %v1201
    %v1702 = vpack.c.b16 %v1206, %v1202
    %v1703 = vpack.c.b16 %v1207, %v1203
    %v1704 = vpack.c.b16 %v1208, %v1204
    %v1705 = vpack.c.b16 %v1213, %v1209
    %v1706 = vpack.c.b16 %v1214, %v1210
    %v1707 = vpack.c.b16 %v1215, %v1211
    %v1708 = vpack.c.b16 %v1216, %v1212
    %v1709 = vpack.c.b16 %v1221, %v1217
    %v1710 = vpack.c.b16 %v1222, %v1218
    %v1711 = vpack.c.b16 %v1223, %v1219
    %v1712 = vpack.c.b16 %v1224, %v1220
    %v1713 = vpack.c.b16 %v1229, %v1225
    %v1714 = vpack.c.b16 %v1230, %v1226
    %v1715 = vpack.c.b16 %v1231, %v1227
    %v1716 = vpack.c.b16 %v1232, %v1228
    %v1717 = vpack.c.b16 %v1237, %v1233
    %v1718 = vpack.c.b16 %v1238, %v1234
    %v1719 = vpack.c.b16 %v1239, %v1235
    %v1720 = vpack.c.b16 %v1240, %v1236
    %v1721 = vpack.c.b16 %v1245, %v1241
    %v1722 = vpack.c.b16 %v1246, %v1242
    %v1723 = vpack.c.b16 %v1247, %v1243
    %v1724 = vpack.c.b16 %v1248, %v1244
    %v1725 = vpack.c.b16 %v1253, %v1249
    %v1726 = vpack.c.b16 %v1254, %v1250
    %v1727 = vpack.c.b16 %v1255, %v1251
    %v1728 = vpack.c.b16 %v1256, %v1252
    %v1729 = vpack.c.b16 %v1261, %v1257
    %v1730 = vpack.c.b16 %v1262, %v1258
    %v1731 = vpack.c.b16 %v1263, %v1259
    %v1732 = vpack.c.b16 %v1264, %v1260
    %v1733 = vpack.c.b16 %v1269, %v1265
    %v1734 = vpack.c.b16 %v1270, %v1266
    %v1735 = vpack.c.b16 %v1271, %v1267
    %v1736 = vpack.c.b16 %v1272, %v1268
    %v1737 = vpack.c.b16 %v1277, %v1273
    %v1738 = vpack.c.b16 %v1278, %v1274
    %v1739 = vpack.c.b16 %v1279, %v1275
    %v1740 = vpack.c.b16 %v1280, %v1276
    %v1741 = vpack.c.b16 %v1285, %v1281
    %v1742 = vpack.c.b16 %v1286, %v1282
    %v1743 = vpack.c.b16 %v1287, %v1283
    %v1744 = vpack.c.b16 %v1288, %v1284
    %v1745 = vpack.c.b16 %v1293, %v1289
    %v1746 = vpack.c.b16 %v1294, %v1290
    %v1747 = vpack.c.b16 %v1295, %v1291
    %v1748 = vpack.c.b16 %v1296, %v1292
    %v1749 = vpack.c.b16 %v1301, %v1297
    %v1750 = vpack.c.b16 %v1302, %v1298
    %v1751 = vpack.c.b16 %v1303, %v1299
    %v1752 = vpack.c.b16 %v1304, %v1300
    %v1753 = vpack.c.b16 %v1309, %v1305
    %v1754 = vpack.c.b16 %v1310, %v1306
    %v1755 = vpack.c.b16 %v1311, %v1307
    %v1756 = vpack.c.b16 %v1312, %v1308
    %v1757 = vpack.c.b16 %v1317, %v1313
    %v1758 = vpack.c.b16 %v1318, %v1314
    %v1759 = vpack.c.b16 %v1319, %v1315
    %v1760 = vpack.c.b16 %v1320, %v1316
    %v1761 = vpack.c.b16 %v1325, %v1321
    %v1762 = vpack.c.b16 %v1326, %v1322
    %v1763 = vpack.c.b16 %v1327, %v1323
    %v1764 = vpack.c.b16 %v1328, %v1324
    %v1765 = vpack.c.b16 %v1333, %v1329
    %v1766 = vpack.c.b16 %v1334, %v1330
    %v1767 = vpack.c.b16 %v1335, %v1331
    %v1768 = vpack.c.b16 %v1336, %v1332
    %v1769 = vpack.c.b16 %v1341, %v1337
    %v1770 = vpack.c.b16 %v1342, %v1338
    %v1771 = vpack.c.b16 %v1343, %v1339
    %v1772 = vpack.c.b16 %v1344, %v1340
    %v1773 = vpack.c.b16 %v1349, %v1345
    %v1774 = vpack.c.b16 %v1350, %v1346
    %v1775 = vpack.c.b16 %v1351, %v1347
    %v1776 = vpack.c.b16 %v1352, %v1348
    %v1777 = vpack.c.b16 %v1357, %v1353
    %v1778 = vpack.c.b16 %v1358, %v1354
    %v1779 = vpack.c.b16 %v1359, %v1355
    %v1780 = vpack.c.b16 %v1360, %v1356
    %v1781 = vpack.c.b16 %v1365, %v1361
    %v1782 = vpack.c.b16 %v1366, %v1362
    %v1783 = vpack.c.b16 %v1367, %v1363
    %v1784 = vpack.c.b16 %v1368, %v1364
    %v1785 = vpack.c.b16 %v1373, %v1369
    %v1786 = vpack.c.b16 %v1374, %v1370
    %v1787 = vpack.c.b16 %v1375, %v1371
    %v1788 = vpack.c.b16 %v1376, %v1372
    %v1789 = vpack.c.b16 %v1381, %v1377
    %v1790 = vpack.c.b16 %v1382, %v1378
    %v1791 = vpack.c.b16 %v1383, %v1379
    %v1792 = vpack.c.b16 %v1384, %v1380
    %v1793 = vpack.c.b16 %v1389, %v1385
    %v1794 = vpack.c.b16 %v1390, %v1386
    %v1795 = vpack.c.b16 %v1391, %v1387
    %v1796 = vpack.c.b16 %v1392, %v1388
    %v1797 = vpack.c.b16 %v1397, %v1393
    %v1798 = vpack.c.b16 %v1398, %v1394
    %v1799 = vpack.c.b16 %v1399, %v1395
    %v1800 = vpack.c.b16 %v1400, %v1396
    %v1801 = vpack.c.b16 %v1405, %v1401
    %v1802 = vpack.c.b16 %v1406, %v1402
    %v1803 = vpack.c.b16 %v1407, %v1403
    %v1804 = vpack.c.b16 %v1408, %v1404
    %v1805 = vpack.c.b16 %v1413, %v1409
    %v1806 = vpack.c.b16 %v1414, %v1410
    %v1807 = vpack.c.b16 %v1415, %v1411
    %v1808 = vpack.c.b16 %v1416, %v1412
    %v1809 = vpack.c.b16 %v1421, %v1417
    %v1810 = vpack.c.b16 %v1422, %v1418
    %v1811 = vpack.c.b16 %v1423, %v1419
    %v1812 = vpack.c.b16 %v1424, %v1420
    %v1813 = vpack.c.b16 %v1429, %v1425
    %v1814 = vpack.c.b16 %v1430, %v1426
    %v1815 = vpack.c.b16 %v1431, %v1427
    %v1816 = vpack.c.b16 %v1432, %v1428
    %v1817 = vpack.c.b16 %v1437, %v1433
    %v1818 = vpack.c.b16 %v1438, %v1434
    %v1819 = vpack.c.b16 %v1439, %v1435
    %v1820 = vpack.c.b16 %v1440, %v1436
    %v1821 = vpack.c.b16 %v1445, %v1441
    %v1822 = vpack.c.b16 %v1446, %v1442
    %v1823 = vpack.c.b16 %v1447, %v1443
    %v1824 = vpack.c.b16 %v1448, %v1444
    %v1825 = vpack.c.b16 %v1453, %v1449
    %v1826 = vpack.c.b16 %v1454, %v1450
    %v1827 = vpack.c.b16 %v1455, %v1451
    %v1828 = vpack.c.b16 %v1456, %v1452
    %v1829 = vpack.c.b16 %v1461, %v1457
    %v1830 = vpack.c.b16 %v1462, %v1458
    %v1831 = vpack.c.b16 %v1463, %v1459
    %v1832 = vpack.c.b16 %v1464, %v1460
    %v1833 = vpack.c.b16 %v1469, %v1465
    %v1834 = vpack.c.b16 %v1470, %v1466
    %v1835 = vpack.c.b16 %v1471, %v1467
    %v1836 = vpack.c.b16 %v1472, %v1468
    %v1837 = vpack.c.b16 %v1477, %v1473
    %v1838 = vpack.c.b16 %v1478, %v1474
    %v1839 = vpack.c.b16 %v1479, %v1475
    %v1840 = vpack.c.b16 %v1480, %v1476
    %v1841 = vpack.c.b16 %v1485, %v1481
    %v1842 = vpack.c.b16 %v1486, %v1482
    %v1843 = vpack.c.b16 %v1487, %v1483
    %v1844 = vpack.c.b16 %v1488, %v1484
    %v1845 = vpack.c.b16 %v1493, %v1489
    %v1846 = vpack.c.b16 %v1494, %v1490
    %v1847 = vpack.c.b16 %v1495, %v1491
    %v1848 = vpack.c.b16 %v1496, %v1492
    %v1849 = vpack.c.b16 %v1501, %v1497
    %v1850 = vpack.c.b16 %v1502, %v1498
    %v1851 = vpack.c.b16 %v1503, %v1499
    %v1852 = vpack.c.b16 %v1504, %v1500
    %v1853 = vpack.c.b16 %v1509, %v1505
    %v1854 = vpack.c.b16 %v1510, %v1506
    %v1855 = vpack.c.b16 %v1511, %v1507
    %v1856 = vpack.c.b16 %v1512, %v1508
    %v1857 = vpack.c.b16 %v1517, %v1513
    %v1858 = vpack.c.b16 %v1518, %v1514
    %v1859 = vpack.c.b16 %v1519, %v1515
    %v1860 = vpack.c.b16 %v1520, %v1516
    %v1861 = vpack.c.b16 %v1525, %v1521
    %v1862 = vpack.c.b16 %v1526, %v1522
    %v1863 = vpack.c.b16 %v1527, %v1523
    %v1864 = vpack.c.b16 %v1528, %v1524
    %v1865 = vpack.c.b16 %v1533, %v1529
    %v1866 = vpack.c.b16 %v1534, %v1530
    %v1867 = vpack.c.b16 %v1535, %v1531
    %v1868 = vpack.c.b16 %v1536, %v1532
    %v1869 = vpack.c.b16 %v1541, %v1537
    %v1870 = vpack.c.b16 %v1542, %v1538
    %v1871 = vpack.c.b16 %v1543, %v1539
    %v1872 = vpack.c.b16 %v1544, %v1540
    %v1873 = vpack.c.b16 %v1549, %v1545
    %v1874 = vpack.c.b16 %v1550, %v1546
    %v1875 = vpack.c.b16 %v1551, %v1547
    %v1876 = vpack.c.b16 %v1552, %v1548
    %v1877 = vpack.c.b16 %v1557, %v1553
    %v1878 = vpack.c.b16 %v1558, %v1554
    %v1879 = vpack.c.b16 %v1559, %v1555
    %v1880 = vpack.c.b16 %v1560, %v1556
    %v1881 = vpack.c.b16 %v1565, %v1561
    %v1882 = vpack.c.b16 %v1566, %v1562
    %v1883 = vpack.c.b16 %v1567, %v1563
    %v1884 = vpack.c.b16 %v1568, %v1564
    %v1885 = vpack.c.b16 %v1573, %v1569
    %v1886 = vpack.c.b16 %v1574, %v1570
    %v1887 = vpack.c.b16 %v1575, %v1571
    %v1888 = vpack.c.b16 %v1576, %v1572
    %v1889 = vpack.c.b16 %v1581, %v1577
    %v1890 = vpack.c.b16 %v1582, %v1578
    %v1891 = vpack.c.b16 %v1583, %v1579
    %v1892 = vpack.c.b16 %v1584, %v1580
    %v1893 = vpack.c.b16 %v1589, %v1585
    %v1894 = vpack.c.b16 %v1590, %v1586
    %v1895 = vpack.c.b16 %v1591, %v1587
    %v1896 = vpack.c.b16 %v1592, %v1588
    %v1897 = vpack.c.b16 %v1597, %v1593
    %v1898 = vpack.c.b16 %v1598, %v1594
    %v1899 = vpack.c.b16 %v1599, %v1595
    %v1900 = vpack.c.b16 %v1600, %v1596
    %v1901 = vpack.c.b16 %v1605, %v1601
    %v1902 = vpack.c.b16 %v1606, %v1602
    %v1903 = vpack.c.b16 %v1607, %v1603
    %v1904 = vpack.c.b16 %v1608, %v1604
    %v1905 = vpack.c.b16 %v1613, %v1609
    %v1906 = vpack.c.b16 %v1614, %v1610
    %v1907 = vpack.c.b16 %v1615, %v1611
    %v1908 = vpack.c.b16 %v1616, %v1612
    %v1909 = vpack.c.b16 %v1621, %v1617
    %v1910 = vpack.c.b16 %v1622, %v1618
    %v1911 = vpack.c.b16 %v1623, %v1619
    %v1912 = vpack.c.b16 %v1624, %v1620
    %v1913 = vpack.c.b16 %v1629, %v1625
    %v1914 = vpack.c.b16 %v1630, %v1626
    %v1915 = vpack.c.b16 %v1631, %v1627
    %v1916 = vpack.c.b16 %v1632, %v1628
    %v1917 = vpack.c.b16 %v1637, %v1633
    %v1918 = vpack.c.b16 %v1638, %v1634
    %v1919 = vpack.c.b16 %v1639, %v1635
    %v1920 = vpack.c.b16 %v1640, %v1636
    %v1921 = vpack.c.b16 %v1645, %v1641
    %v1922 = vpack.c.b16 %v1646, %v1642
    %v1923 = vpack.c.b16 %v1647, %v1643
    %v1924 = vpack.c.b16 %v1648, %v1644
    %v1925 = vpack.c.b16 %v1653, %v1649
    %v1926 = vpack.c.b16 %v1654, %v1650
    %v1927 = vpack.c.b16 %v1655, %v1651
    %v1928 = vpack.c.b16 %v1656, %v1652
    %v1929 = vpack.c.b16 %v1661, %v1657
    %v1930 = vpack.c.b16 %v1662, %v1658
    %v1931 = vpack.c.b16 %v1663, %v1659
    %v1932 = vpack.c.b16 %v1664, %v1660
    %v1933 = vpack.c.b16 %v1669, %v1665
    %v1934 = vpack.c.b16 %v1670, %v1666
    %v1935 = vpack.c.b16 %v1671, %v1667
    %v1936 = vpack.c.b16 %v1672, %v1668
    %v1937 = vpack.c.b16 %v1677, %v1673
    %v1938 = vpack.c.b16 %v1678, %v1674
    %v1939 = vpack.c.b16 %v1679, %v1675
    %v1940 = vpack.c.b16 %v1680, %v1676
    %v1941 = vpack.c.b16 %v1685, %v1681
    %v1942 = vpack.c.b16 %v1686, %v1682
    %v1943 = vpack.c.b16 %v1687, %v1683
    %v1944 = vpack.c.b16 %v1688, %v1684
    %2201 = vmatprep.subr.bf16.mxu0 %v1690
    %2202 = vmatpush1.bf16.msra.mxu0 %v1689
    %2203 = vmatprep.subr.bf16.mxu0 %v1694
    %2204 = vmatpush1.bf16.msra.mxu0 %v1693
    %2205 = vmatprep.subr.bf16.mxu0 %v1698
    %2206 = vmatpush1.bf16.msra.mxu0 %v1697
    %2207 = vmatprep.subr.bf16.mxu0 %v1702
    %2208 = vmatpush1.bf16.msra.mxu0 %v1701
    %2209 = vmatprep.subr.bf16.mxu0 %v1706
    %2210 = vmatpush1.bf16.msra.mxu0 %v1705
    %2211 = vmatprep.subr.bf16.mxu0 %v1710
    %2212 = vmatpush1.bf16.msra.mxu0 %v1709
    %2213 = vmatprep.subr.bf16.mxu0 %v1714
    %2214 = vmatpush1.bf16.msra.mxu0 %v1713
    %2215 = vmatprep.subr.bf16.mxu0 %v1718
    %2216 = vmatpush1.bf16.msra.mxu0 %v1717
    %2217 = vmatprep.subr.bf16.mxu0 %v1722
    %2218 = vmatpush1.bf16.msra.mxu0 %v1721
    %2219 = vmatprep.subr.bf16.mxu0 %v1726
    %2220 = vmatpush1.bf16.msra.mxu0 %v1725
    %2221 = vmatprep.subr.bf16.mxu0 %v1730
    %2222 = vmatpush1.bf16.msra.mxu0 %v1729
    %2223 = vmatprep.subr.bf16.mxu0 %v1734
    %2224 = vmatpush1.bf16.msra.mxu0 %v1733
    %2225 = vmatprep.subr.bf16.mxu0 %v1738
    %2226 = vmatpush1.bf16.msra.mxu0 %v1737
    %2227 = vmatprep.subr.bf16.mxu0 %v1742
    %2228 = vmatpush1.bf16.msra.mxu0 %v1741
    %2229 = vmatprep.subr.bf16.mxu0 %v1746
    %2230 = vmatpush1.bf16.msra.mxu0 %v1745
    %2231 = vmatprep.subr.bf16.mxu0 %v1750
    %2232 = vmatpush1.bf16.msra.mxu0 %v1749
    %2233 = vmatprep.mubr.bf16.mxu0 %v162
    %2234 = vmatmul.mubr.bf16.gmra.mrb[0].mxu0 %v161
    %v2235 = vpop.f32.mrb[0].mxu0
    %v2236 = vadd.f32 %v874, %v2235
    %v2237 = vpop.f32.mrb[0].mxu0
    %v2238 = vadd.f32 %v876, %v2237
    %v2239 = vpop.f32.mrb[0].mxu0
    %v2240 = vpop.f32.mrb[0].mxu0
    %2241 = vdwg.mxu0
    %2242 = vmatprep.subr.bf16.mxu0 %v1754
    %2243 = vmatpush1.bf16.msra.mxu0 %v1753
    %2244 = vmatprep.subr.bf16.mxu0 %v1758
    %2245 = vmatpush1.bf16.msra.mxu0 %v1757
    %2246 = vmatprep.subr.bf16.mxu0 %v1762
    %2247 = vmatpush1.bf16.msra.mxu0 %v1761
    %2248 = vmatprep.subr.bf16.mxu0 %v1766
    %2249 = vmatpush1.bf16.msra.mxu0 %v1765
    %2250 = vmatprep.subr.bf16.mxu0 %v1770
    %2251 = vmatpush1.bf16.msra.mxu0 %v1769
    %2252 = vmatprep.subr.bf16.mxu0 %v1774
    %2253 = vmatpush1.bf16.msra.mxu0 %v1773
    %2254 = vmatprep.subr.bf16.mxu0 %v1778
    %2255 = vmatpush1.bf16.msra.mxu0 %v1777
    %2256 = vmatprep.subr.bf16.mxu0 %v1782
    %2257 = vmatpush1.bf16.msra.mxu0 %v1781
    %2258 = vmatprep.subr.bf16.mxu0 %v1786
    %2259 = vmatpush1.bf16.msra.mxu0 %v1785
    %2260 = vmatprep.subr.bf16.mxu0 %v1790
    %2261 = vmatpush1.bf16.msra.mxu0 %v1789
    %2262 = vmatprep.subr.bf16.mxu0 %v1794
    %2263 = vmatpush1.bf16.msra.mxu0 %v1793
    %2264 = vmatprep.subr.bf16.mxu0 %v1798
    %2265 = vmatpush1.bf16.msra.mxu0 %v1797
    %2266 = vmatprep.subr.bf16.mxu0 %v1802
    %2267 = vmatpush1.bf16.msra.mxu0 %v1801
    %2268 = vmatprep.subr.bf16.mxu0 %v1806
    %2269 = vmatpush1.bf16.msra.mxu0 %v1805
    %2270 = vmatprep.subr.bf16.mxu0 %v1810
    %2271 = vmatpush1.bf16.msra.mxu0 %v1809
    %2272 = vmatprep.subr.bf16.mxu0 %v1814
    %2273 = vmatpush1.bf16.msra.mxu0 %v1813
    %2274 = vmatprep.mubr.bf16.mxu0 %v164
    %2275 = vmatmul.mubr.bf16.gmra.mrb[0].mxu0 %v163
    %v2276 = vpop.f32.mrb[0].mxu0
    %v2277 = vadd.f32 %v2236, %v2276
    %v2278 = vpop.f32.mrb[0].mxu0
    %v2279 = vadd.f32 %v2238, %v2278
    %v2280 = vpop.f32.mrb[0].mxu0
    %v2281 = vpop.f32.mrb[0].mxu0
    %2282 = vdwg.mxu0
    %2283 = vmatprep.subr.bf16.mxu0 %v1818
    %2284 = vmatpush1.bf16.msra.mxu0 %v1817
    %2285 = vmatprep.subr.bf16.mxu0 %v1822
    %2286 = vmatpush1.bf16.msra.mxu0 %v1821
    %2287 = vmatprep.subr.bf16.mxu0 %v1826
    %2288 = vmatpush1.bf16.msra.mxu0 %v1825
    %2289 = vmatprep.subr.bf16.mxu0 %v1830
    %2290 = vmatpush1.bf16.msra.mxu0 %v1829
    %2291 = vmatprep.subr.bf16.mxu0 %v1834
    %2292 = vmatpush1.bf16.msra.mxu0 %v1833
    %2293 = vmatprep.subr.bf16.mxu0 %v1838
    %2294 = vmatpush1.bf16.msra.mxu0 %v1837
    %2295 = vmatprep.subr.bf16.mxu0 %v1842
    %2296 = vmatpush1.bf16.msra.mxu0 %v1841
    %2297 = vmatprep.subr.bf16.mxu0 %v1846
    %2298 = vmatpush1.bf16.msra.mxu0 %v1845
    %2299 = vmatprep.subr.bf16.mxu0 %v1850
    %2300 = vmatpush1.bf16.msra.mxu0 %v1849
    %2301 = vmatprep.subr.bf16.mxu0 %v1854
    %2302 = vmatpush1.bf16.msra.mxu0 %v1853
    %2303 = vmatprep.subr.bf16.mxu0 %v1858
    %2304 = vmatpush1.bf16.msra.mxu0 %v1857
    %2305 = vmatprep.subr.bf16.mxu0 %v1862
    %2306 = vmatpush1.bf16.msra.mxu0 %v1861
    %2307 = vmatprep.subr.bf16.mxu0 %v1866
    %2308 = vmatpush1.bf16.msra.mxu0 %v1865
    %2309 = vmatprep.subr.bf16.mxu0 %v1870
    %2310 = vmatpush1.bf16.msra.mxu0 %v1869
    %2311 = vmatprep.subr.bf16.mxu0 %v1874
    %2312 = vmatpush1.bf16.msra.mxu0 %v1873
    %2313 = vmatprep.subr.bf16.mxu0 %v1878
    %2314 = vmatpush1.bf16.msra.mxu0 %v1877
    %2315 = vmatprep.mubr.bf16.mxu0 %v166
    %2316 = vmatmul.mubr.bf16.gmra.mrb[0].mxu0 %v165
    %v2317 = vpop.f32.mrb[0].mxu0
    %v2318 = vadd.f32 %v2277, %v2317
    %v2319 = vpop.f32.mrb[0].mxu0
    %v2320 = vadd.f32 %v2279, %v2319
    %v2321 = vpop.f32.mrb[0].mxu0
    %v2322 = vpop.f32.mrb[0].mxu0
    %2323 = vdwg.mxu0
    %2324 = vmatprep.subr.bf16.mxu0 %v1882
    %2325 = vmatpush1.bf16.msra.mxu0 %v1881
    %2326 = vmatprep.subr.bf16.mxu0 %v1886
    %2327 = vmatpush1.bf16.msra.mxu0 %v1885
    %2328 = vmatprep.subr.bf16.mxu0 %v1890
    %2329 = vmatpush1.bf16.msra.mxu0 %v1889
    %2330 = vmatprep.subr.bf16.mxu0 %v1894
    %2331 = vmatpush1.bf16.msra.mxu0 %v1893
    %2332 = vmatprep.subr.bf16.mxu0 %v1898
    %2333 = vmatpush1.bf16.msra.mxu0 %v1897
    %2334 = vmatprep.subr.bf16.mxu0 %v1902
    %2335 = vmatpush1.bf16.msra.mxu0 %v1901
    %2336 = vmatprep.subr.bf16.mxu0 %v1906
    %2337 = vmatpush1.bf16.msra.mxu0 %v1905
    %2338 = vmatprep.subr.bf16.mxu0 %v1910
    %2339 = vmatpush1.bf16.msra.mxu0 %v1909
    %2340 = vmatprep.subr.bf16.mxu0 %v1914
    %2341 = vmatpush1.bf16.msra.mxu0 %v1913
    %2342 = vmatprep.subr.bf16.mxu0 %v1918
    %2343 = vmatpush1.bf16.msra.mxu0 %v1917
    %2344 = vmatprep.subr.bf16.mxu0 %v1922
    %2345 = vmatpush1.bf16.msra.mxu0 %v1921
    %2346 = vmatprep.subr.bf16.mxu0 %v1926
    %2347 = vmatpush1.bf16.msra.mxu0 %v1925
    %2348 = vmatprep.subr.bf16.mxu0 %v1930
    %2349 = vmatpush1.bf16.msra.mxu0 %v1929
    %2350 = vmatprep.subr.bf16.mxu0 %v1934
    %2351 = vmatpush1.bf16.msra.mxu0 %v1933
    %2352 = vmatprep.subr.bf16.mxu0 %v1938
    %2353 = vmatpush1.bf16.msra.mxu0 %v1937
    %2354 = vmatprep.subr.bf16.mxu0 %v1942
    %2355 = vmatpush1.bf16.msra.mxu0 %v1941
    %2356 = vmatprep.mubr.bf16.mxu0 %v168
    %2357 = vmatmul.mubr.bf16.gmra.mrb[0].mxu0 %v167
    %v2358 = vpop.f32.mrb[0].mxu0
    %v2359 = vadd.f32 %v2318, %v2358
    %v2360 = vpop.f32.mrb[0].mxu0
    %v2361 = vadd.f32 %v2320, %v2360
    %v2362 = vpop.f32.mrb[0].mxu0
    %v2363 = vpop.f32.mrb[0].mxu0
    %2364 = vdwg.mxu0
    %2365 = vmatprep.subr.bf16.mxu0 %v1692
    %2366 = vmatpush1.bf16.msra.mxu0 %v1691
    %2367 = vmatprep.subr.bf16.mxu0 %v1696
    %2368 = vmatpush1.bf16.msra.mxu0 %v1695
    %2369 = vmatprep.subr.bf16.mxu0 %v1700
    %2370 = vmatpush1.bf16.msra.mxu0 %v1699
    %2371 = vmatprep.subr.bf16.mxu0 %v1704
    %2372 = vmatpush1.bf16.msra.mxu0 %v1703
    %2373 = vmatprep.subr.bf16.mxu0 %v1708
    %2374 = vmatpush1.bf16.msra.mxu0 %v1707
    %2375 = vmatprep.subr.bf16.mxu0 %v1712
    %2376 = vmatpush1.bf16.msra.mxu0 %v1711
    %2377 = vmatprep.subr.bf16.mxu0 %v1716
    %2378 = vmatpush1.bf16.msra.mxu0 %v1715
    %2379 = vmatprep.subr.bf16.mxu0 %v1720
    %2380 = vmatpush1.bf16.msra.mxu0 %v1719
    %2381 = vmatprep.subr.bf16.mxu0 %v1724
    %2382 = vmatpush1.bf16.msra.mxu0 %v1723
    %2383 = vmatprep.subr.bf16.mxu0 %v1728
    %2384 = vmatpush1.bf16.msra.mxu0 %v1727
    %2385 = vmatprep.subr.bf16.mxu0 %v1732
    %2386 = vmatpush1.bf16.msra.mxu0 %v1731
    %2387 = vmatprep.subr.bf16.mxu0 %v1736
    %2388 = vmatpush1.bf16.msra.mxu0 %v1735
    %2389 = vmatprep.subr.bf16.mxu0 %v1740
    %2390 = vmatpush1.bf16.msra.mxu0 %v1739
    %2391 = vmatprep.subr.bf16.mxu0 %v1744
    %2392 = vmatpush1.bf16.msra.mxu0 %v1743
    %2393 = vmatprep.subr.bf16.mxu0 %v1748
    %2394 = vmatpush1.bf16.msra.mxu0 %v1747
    %2395 = vmatprep.subr.bf16.mxu0 %v1752
    %2396 = vmatpush1.bf16.msra.mxu0 %v1751
    %2397 = vmatprep.mubr.bf16.mxu0 %v162
    %2398 = vmatmul.mubr.bf16.gmra.mrb[0].mxu0 %v161
    %v2399 = vpop.f32.mrb[0].mxu0
    %v2400 = vadd.f32 %v915, %v2399
    %v2401 = vpop.f32.mrb[0].mxu0
    %v2402 = vadd.f32 %v917, %v2401
    %v2403 = vpop.f32.mrb[0].mxu0
    %v2404 = vpop.f32.mrb[0].mxu0
    %2405 = vdwg.mxu0
    %2406 = vmatprep.subr.bf16.mxu0 %v1756
    %2407 = vmatpush1.bf16.msra.mxu0 %v1755
    %2408 = vmatprep.subr.bf16.mxu0 %v1760
    %2409 = vmatpush1.bf16.msra.mxu0 %v1759
    %2410 = vmatprep.subr.bf16.mxu0 %v1764
    %2411 = vmatpush1.bf16.msra.mxu0 %v1763
    %2412 = vmatprep.subr.bf16.mxu0 %v1768
    %2413 = vmatpush1.bf16.msra.mxu0 %v1767
    %2414 = vmatprep.subr.bf16.mxu0 %v1772
    %2415 = vmatpush1.bf16.msra.mxu0 %v1771
    %2416 = vmatprep.subr.bf16.mxu0 %v1776
    %2417 = vmatpush1.bf16.msra.mxu0 %v1775
    %2418 = vmatprep.subr.bf16.mxu0 %v1780
    %2419 = vmatpush1.bf16.msra.mxu0 %v1779
    %2420 = vmatprep.subr.bf16.mxu0 %v1784
    %2421 = vmatpush1.bf16.msra.mxu0 %v1783
    %2422 = vmatprep.subr.bf16.mxu0 %v1788
    %2423 = vmatpush1.bf16.msra.mxu0 %v1787
    %2424 = vmatprep.subr.bf16.mxu0 %v1792
    %2425 = vmatpush1.bf16.msra.mxu0 %v1791
    %2426 = vmatprep.subr.bf16.mxu0 %v1796
    %2427 = vmatpush1.bf16.msra.mxu0 %v1795
    %2428 = vmatprep.subr.bf16.mxu0 %v1800
    %2429 = vmatpush1.bf16.msra.mxu0 %v1799
    %2430 = vmatprep.subr.bf16.mxu0 %v1804
    %2431 = vmatpush1.bf16.msra.mxu0 %v1803
    %2432 = vmatprep.subr.bf16.mxu0 %v1808
    %2433 = vmatpush1.bf16.msra.mxu0 %v1807
    %2434 = vmatprep.subr.bf16.mxu0 %v1812
    %2435 = vmatpush1.bf16.msra.mxu0 %v1811
    %2436 = vmatprep.subr.bf16.mxu0 %v1816
    %2437 = vmatpush1.bf16.msra.mxu0 %v1815
    %2438 = vmatprep.mubr.bf16.mxu0 %v164
    %2439 = vmatmul.mubr.bf16.gmra.mrb[0].mxu0 %v163
    %v2440 = vpop.f32.mrb[0].mxu0
    %v2441 = vadd.f32 %v2400, %v2440
    %v2442 = vpop.f32.mrb[0].mxu0
    %v2443 = vadd.f32 %v2402, %v2442
    %v2444 = vpop.f32.mrb[0].mxu0
    %v2445 = vpop.f32.mrb[0].mxu0
    %2446 = vdwg.mxu0
    %2447 = vmatprep.subr.bf16.mxu0 %v1820
    %2448 = vmatpush1.bf16.msra.mxu0 %v1819
    %2449 = vmatprep.subr.bf16.mxu0 %v1824
    %2450 = vmatpush1.bf16.msra.mxu0 %v1823
    %2451 = vmatprep.subr.bf16.mxu0 %v1828
    %2452 = vmatpush1.bf16.msra.mxu0 %v1827
    %2453 = vmatprep.subr.bf16.mxu0 %v1832
    %2454 = vmatpush1.bf16.msra.mxu0 %v1831
    %2455 = vmatprep.subr.bf16.mxu0 %v1836
    %2456 = vmatpush1.bf16.msra.mxu0 %v1835
    %2457 = vmatprep.subr.bf16.mxu0 %v1840
    %2458 = vmatpush1.bf16.msra.mxu0 %v1839
    %2459 = vmatprep.subr.bf16.mxu0 %v1844
    %2460 = vmatpush1.bf16.msra.mxu0 %v1843
    %2461 = vmatprep.subr.bf16.mxu0 %v1848
    %2462 = vmatpush1.bf16.msra.mxu0 %v1847
    %2463 = vmatprep.subr.bf16.mxu0 %v1852
    %2464 = vmatpush1.bf16.msra.mxu0 %v1851
    %2465 = vmatprep.subr.bf16.mxu0 %v1856
    %2466 = vmatpush1.bf16.msra.mxu0 %v1855
    %2467 = vmatprep.subr.bf16.mxu0 %v1860
    %2468 = vmatpush1.bf16.msra.mxu0 %v1859
    %2469 = vmatprep.subr.bf16.mxu0 %v1864
    %2470 = vmatpush1.bf16.msra.mxu0 %v1863
    %2471 = vmatprep.subr.bf16.mxu0 %v1868
    %2472 = vmatpush1.bf16.msra.mxu0 %v1867
    %2473 = vmatprep.subr.bf16.mxu0 %v1872
    %2474 = vmatpush1.bf16.msra.mxu0 %v1871
    %2475 = vmatprep.subr.bf16.mxu0 %v1876
    %2476 = vmatpush1.bf16.msra.mxu0 %v1875
    %2477 = vmatprep.subr.bf16.mxu0 %v1880
    %2478 = vmatpush1.bf16.msra.mxu0 %v1879
    %2479 = vmatprep.mubr.bf16.mxu0 %v166
    %2480 = vmatmul.mubr.bf16.gmra.mrb[0].mxu0 %v165
    %v2481 = vpop.f32.mrb[0].mxu0
    %v2482 = vadd.f32 %v2441, %v2481
    %v2483 = vpop.f32.mrb[0].mxu0
    %v2484 = vadd.f32 %v2443, %v2483
    %v2485 = vpop.f32.mrb[0].mxu0
    %v2486 = vpop.f32.mrb[0].mxu0
    %2487 = vdwg.mxu0
    %2488 = vmatprep.subr.bf16.mxu0 %v1884
    %2489 = vmatpush1.bf16.msra.mxu0 %v1883
    %2490 = vmatprep.subr.bf16.mxu0 %v1888
    %2491 = vmatpush1.bf16.msra.mxu0 %v1887
    %2492 = vmatprep.subr.bf16.mxu0 %v1892
    %2493 = vmatpush1.bf16.msra.mxu0 %v1891
    %2494 = vmatprep.subr.bf16.mxu0 %v1896
    %2495 = vmatpush1.bf16.msra.mxu0 %v1895
    %2496 = vmatprep.subr.bf16.mxu0 %v1900
    %2497 = vmatpush1.bf16.msra.mxu0 %v1899
    %2498 = vmatprep.subr.bf16.mxu0 %v1904
    %2499 = vmatpush1.bf16.msra.mxu0 %v1903
    %2500 = vmatprep.subr.bf16.mxu0 %v1908
    %2501 = vmatpush1.bf16.msra.mxu0 %v1907
    %2502 = vmatprep.subr.bf16.mxu0 %v1912
    %2503 = vmatpush1.bf16.msra.mxu0 %v1911
    %2504 = vmatprep.subr.bf16.mxu0 %v1916
    %2505 = vmatpush1.bf16.msra.mxu0 %v1915
    %2506 = vmatprep.subr.bf16.mxu0 %v1920
    %2507 = vmatpush1.bf16.msra.mxu0 %v1919
    %2508 = vmatprep.subr.bf16.mxu0 %v1924
    %2509 = vmatpush1.bf16.msra.mxu0 %v1923
    %2510 = vmatprep.subr.bf16.mxu0 %v1928
    %2511 = vmatpush1.bf16.msra.mxu0 %v1927
    %2512 = vmatprep.subr.bf16.mxu0 %v1932
    %2513 = vmatpush1.bf16.msra.mxu0 %v1931
    %2514 = vmatprep.subr.bf16.mxu0 %v1936
    %2515 = vmatpush1.bf16.msra.mxu0 %v1935
    %2516 = vmatprep.subr.bf16.mxu0 %v1940
    %2517 = vmatpush1.bf16.msra.mxu0 %v1939
    %2518 = vmatprep.subr.bf16.mxu0 %v1944
    %2519 = vmatpush1.bf16.msra.mxu0 %v1943
    %2520 = vmatprep.mubr.bf16.mxu0 %v168
    %2521 = vmatmul.mubr.bf16.gmra.mrb[0].mxu0 %v167
    %v2522 = vpop.f32.mrb[0].mxu0
    %v2523 = vadd.f32 %v2482, %v2522
    %v2524 = vpop.f32.mrb[0].mxu0
    %v2525 = vadd.f32 %v2484, %v2524
    %v2526 = vpop.f32.mrb[0].mxu0
    %v2527 = vpop.f32.mrb[0].mxu0
    %2528 = vdwg.mxu0
    %v2529 = vld [vmem:[%s4] sm:$0xf]
    %v2531 = vlaneseq
    %v2532 = vshrl.u32 %v2531, 7
    %v2533 = vsub.s32 0, %v2532
    %v2534 = vrot.slane %v2529, %v2533
    %v2535 = vlaneseq
    %v2536 = vshrl.u32 %v2535, 7
    %v2537 = vsub.s32 1, %v2536
    %v2538 = vrot.slane %v2529, %v2537
    %v2539 = vlaneseq
    %v2540 = vshrl.u32 %v2539, 7
    %v2541 = vsub.s32 2, %v2540
    %v2542 = vrot.slane %v2529, %v2541
    %v2543 = vlaneseq
    %v2544 = vshrl.u32 %v2543, 7
    %v2545 = vsub.s32 3, %v2544
    %v2546 = vrot.slane %v2529, %v2545
    %v2551 = vadd.f32 %v2359, %v2534
    %v2552 = vadd.f32 %v2361, %v2538
    %v2553 = vadd.f32 %v2523, %v2542
    %v2554 = vadd.f32 %v2525, %v2546
    %v2555 = vmax.f32 %v2551, 0.0
    %v2556 = vmax.f32 %v2552, 0.0
    %v2557 = vmax.f32 %v2553, 0.0
    %v2558 = vmax.f32 %v2554, 0.0
    %v2559 = vld [vmem:[%s5] sm:$0xf]
    %v2561 = vlaneseq
    %v2562 = vshrl.u32 %v2561, 7
    %v2563 = vsub.s32 0, %v2562
    %v2564 = vrot.slane %v2559, %v2563
    %v2565 = vlaneseq
    %v2566 = vshrl.u32 %v2565, 7
    %v2567 = vsub.s32 1, %v2566
    %v2568 = vrot.slane %v2559, %v2567
    %v2569 = vlaneseq
    %v2570 = vshrl.u32 %v2569, 7
    %v2571 = vsub.s32 2, %v2570
    %v2572 = vrot.slane %v2559, %v2571
    %v2573 = vlaneseq
    %v2574 = vshrl.u32 %v2573, 7
    %v2575 = vsub.s32 3, %v2574
    %v2576 = vrot.slane %v2559, %v2575
    %v2581 = vmul.f32 %v2555, %v2564
    %v2582 = vmul.f32 %v2556, %v2568
    %v2583 = vmul.f32 %v2557, %v2572
    %v2584 = vmul.f32 %v2558, %v2576
    %v2585 = vld [vmem:[%s6] sm:$0xf]
    %v2587 = vlaneseq
    %v2588 = vshrl.u32 %v2587, 7
    %v2589 = vsub.s32 0, %v2588
    %v2590 = vrot.slane %v2585, %v2589
    %v2591 = vlaneseq
    %v2592 = vshrl.u32 %v2591, 7
    %v2593 = vsub.s32 1, %v2592
    %v2594 = vrot.slane %v2585, %v2593
    %v2595 = vlaneseq
    %v2596 = vshrl.u32 %v2595, 7
    %v2597 = vsub.s32 2, %v2596
    %v2598 = vrot.slane %v2585, %v2597
    %v2599 = vlaneseq
    %v2600 = vshrl.u32 %v2599, 7
    %v2601 = vsub.s32 3, %v2600
    %v2602 = vrot.slane %v2585, %v2601
    %v2607 = vadd.f32 %v2581, %v2590
    %v2608 = vadd.f32 %v2582, %v2594
    %v2609 = vadd.f32 %v2583, %v2598
    %v2610 = vadd.f32 %v2584, %v2602
    %v2611 = vpack.c.bf16 %v2607, %v2607
    %v2612 = vpack.c.bf16 %v2608, %v2608
    %v2613 = vpack.c.bf16 %v2609, %v2609
    %v2614 = vpack.c.bf16 %v2610, %v2610
    %v2619 = vcombine.low %v2611, %v2612
    %v2620 = vcombine.low %v2613, %v2614
    %v2622 = vunpack.c.l.s4 1966171168
    %v2623 = vunpack.c.0.s8 %v2622
    %v2624 = vlaneseq
    %v2625 = vshrl.u32 %v2624, 7
    %v2626 = vsub.s32 %v2623, %v2625
    %v2627 = vrot.slane %v2619, %v2626
    %v2629 = vunpack.c.l.s4 1966171168
    %v2630 = vunpack.c.0.s8 %v2629
    %v2631 = vlaneseq
    %v2632 = vshrl.u32 %v2631, 7
    %v2633 = vsub.s32 %v2630, %v2632
    %v2634 = vrot.slane %v2620, %v2633
    %v2635 = vcombine.low %v2627, %v2634
    %v2636 = vcombine.high %v2627, %v2634
    %v2638 = vunpack.c.l.s4 1966171168
    %v2639 = vunpack.c.0.s8 %v2638
    %v2640 = vlaneseq
    %v2641 = vshrl.u32 %v2640, 7
    %v2642 = vsub.s32 %v2639, %v2641
    %v2643 = vrot.slane %v2635, %v2642
    %v2645 = vunpack.c.l.s4 1966171168
    %v2646 = vunpack.c.0.s8 %v2645
    %v2647 = vlaneseq
    %v2648 = vshrl.u32 %v2647, 7
    %v2649 = vsub.s32 %v2646, %v2648
    %v2650 = vrot.slane %v2636, %v2649
    %v2651 = vcombine.high %v2643, %v2643
    %v2652 = vcombine.high %v2650, %v2650
    %2657 = vst [vmem:[#allocation8] sm:$0xf] %v2643
    %2658 = vst [vmem:[#allocation8 + $0x4] sm:$0xf] %v2650
    %2659 = vst [vmem:[#allocation8 + $0x8] sm:$0xf] %v2651
    %2660 = vst [vmem:[#allocation8 + $0xc] sm:$0xf] %v2652
    %v2661 = vld [vmem:[%s7] sm:$0xf]
    %v2662 = vld [vmem:[%s7 + $0x4] sm:$0xf]
    %v2663 = vld [vmem:[%s7 + $0x8] sm:$0xf]
    %v2664 = vld [vmem:[%s7 + $0xc] sm:$0xf]
    %v2665 = vld [vmem:[%s7 + $0x10] sm:$0xf]
    %v2666 = vld [vmem:[%s7 + $0x14] sm:$0xf]
    %v2667 = vld [vmem:[%s7 + $0x18] sm:$0xf]
    %v2668 = vld [vmem:[%s7 + $0x1c] sm:$0xf]
    %v2669 = vld [vmem:[%s7 + $0x20] sm:$0xf]
    %v2670 = vld [vmem:[%s7 + $0x24] sm:$0xf]
    %v2671 = vld [vmem:[%s7 + $0x28] sm:$0xf]
    %v2672 = vld [vmem:[%s7 + $0x2c] sm:$0xf]
    %v2673 = vld [vmem:[%s7 + $0x30] sm:$0xf]
    %v2674 = vld [vmem:[%s7 + $0x34] sm:$0xf]
    %v2675 = vld [vmem:[%s7 + $0x38] sm:$0xf]
    %v2676 = vld [vmem:[%s7 + $0x3c] sm:$0xf]
    %v2677 = vld [vmem:[%s7 + $0x40] sm:$0xf]
    %v2678 = vld [vmem:[%s7 + $0x44] sm:$0xf]
    %v2679 = vld [vmem:[%s7 + $0x48] sm:$0xf]
    %v2680 = vld [vmem:[%s7 + $0x4c] sm:$0xf]
    %v2681 = vld [vmem:[%s7 + $0x50] sm:$0xf]
    %v2682 = vld [vmem:[%s7 + $0x54] sm:$0xf]
    %v2683 = vld [vmem:[%s7 + $0x58] sm:$0xf]
    %v2684 = vld [vmem:[%s7 + $0x5c] sm:$0xf]
    %v2685 = vld [vmem:[%s7 + $0x60] sm:$0xf]
    %v2686 = vld [vmem:[%s7 + $0x64] sm:$0xf]
    %v2687 = vld [vmem:[%s7 + $0x68] sm:$0xf]
    %v2688 = vld [vmem:[%s7 + $0x6c] sm:$0xf]
    %v2689 = vld [vmem:[%s7 + $0x70] sm:$0xf]
    %v2690 = vld [vmem:[%s7 + $0x74] sm:$0xf]
    %v2691 = vld [vmem:[%s7 + $0x78] sm:$0xf]
    %v2692 = vld [vmem:[%s7 + $0x7c] sm:$0xf]
    %v2693 = vld [vmem:[%s7 + $0x80] sm:$0xf]
    %v2694 = vld [vmem:[%s7 + $0x84] sm:$0xf]
    %v2695 = vld [vmem:[%s7 + $0x88] sm:$0xf]
    %v2696 = vld [vmem:[%s7 + $0x8c] sm:$0xf]
    %v2697 = vld [vmem:[%s7 + $0x90] sm:$0xf]
    %v2698 = vld [vmem:[%s7 + $0x94] sm:$0xf]
    %v2699 = vld [vmem:[%s7 + $0x98] sm:$0xf]
    %v2700 = vld [vmem:[%s7 + $0x9c] sm:$0xf]
    %v2701 = vld [vmem:[%s7 + $0xa0] sm:$0xf]
    %v2702 = vld [vmem:[%s7 + $0xa4] sm:$0xf]
    %v2703 = vld [vmem:[%s7 + $0xa8] sm:$0xf]
    %v2704 = vld [vmem:[%s7 + $0xac] sm:$0xf]
    %v2705 = vld [vmem:[%s7 + $0xb0] sm:$0xf]
    %v2706 = vld [vmem:[%s7 + $0xb4] sm:$0xf]
    %v2707 = vld [vmem:[%s7 + $0xb8] sm:$0xf]
    %v2708 = vld [vmem:[%s7 + $0xbc] sm:$0xf]
    %v2709 = vld [vmem:[%s7 + $0xc0] sm:$0xf]
    %v2710 = vld [vmem:[%s7 + $0xc4] sm:$0xf]
    %v2711 = vld [vmem:[%s7 + $0xc8] sm:$0xf]
    %v2712 = vld [vmem:[%s7 + $0xcc] sm:$0xf]
    %v2713 = vld [vmem:[%s7 + $0xd0] sm:$0xf]
    %v2714 = vld [vmem:[%s7 + $0xd4] sm:$0xf]
    %v2715 = vld [vmem:[%s7 + $0xd8] sm:$0xf]
    %v2716 = vld [vmem:[%s7 + $0xdc] sm:$0xf]
    %v2717 = vld [vmem:[%s7 + $0xe0] sm:$0xf]
    %v2718 = vld [vmem:[%s7 + $0xe4] sm:$0xf]
    %v2719 = vld [vmem:[%s7 + $0xe8] sm:$0xf]
    %v2720 = vld [vmem:[%s7 + $0xec] sm:$0xf]
    %v2721 = vld [vmem:[%s7 + $0xf0] sm:$0xf]
    %v2722 = vld [vmem:[%s7 + $0xf4] sm:$0xf]
    %v2723 = vld [vmem:[%s7 + $0xf8] sm:$0xf]
    %v2724 = vld [vmem:[%s7 + $0xfc] sm:$0xf]
    %v2725 = vld [vmem:[%s8] sm:$0x1]
    %v2727 = vlaneseq
    %v2728 = vshrl.u32 %v2727, 7
    %v2729 = vsub.s32 0, %v2728
    %v2730 = vrot.slane %v2725, %v2729
    %v2796 = vunpack.c.l.b16 %v2661
    %v2797 = vunpack.c.l.b16 %v2662
    %v2798 = vunpack.c.l.b16 %v2663
    %v2799 = vunpack.c.l.b16 %v2664
    %v2800 = vunpack.c.l.b16 %v2665
    %v2801 = vunpack.c.l.b16 %v2666
    %v2802 = vunpack.c.l.b16 %v2667
    %v2803 = vunpack.c.l.b16 %v2668
    %v2804 = vunpack.c.l.b16 %v2669
    %v2805 = vunpack.c.l.b16 %v2670
    %v2806 = vunpack.c.l.b16 %v2671
    %v2807 = vunpack.c.l.b16 %v2672
    %v2808 = vunpack.c.l.b16 %v2673
    %v2809 = vunpack.c.l.b16 %v2674
    %v2810 = vunpack.c.l.b16 %v2675
    %v2811 = vunpack.c.l.b16 %v2676
    %v2812 = vunpack.c.l.b16 %v2677
    %v2813 = vunpack.c.l.b16 %v2678
    %v2814 = vunpack.c.l.b16 %v2679
    %v2815 = vunpack.c.l.b16 %v2680
    %v2816 = vunpack.c.l.b16 %v2681
    %v2817 = vunpack.c.l.b16 %v2682
    %v2818 = vunpack.c.l.b16 %v2683
    %v2819 = vunpack.c.l.b16 %v2684
    %v2820 = vunpack.c.l.b16 %v2685
    %v2821 = vunpack.c.l.b16 %v2686
    %v2822 = vunpack.c.l.b16 %v2687
    %v2823 = vunpack.c.l.b16 %v2688
    %v2824 = vunpack.c.l.b16 %v2689
    %v2825 = vunpack.c.l.b16 %v2690
    %v2826 = vunpack.c.l.b16 %v2691
    %v2827 = vunpack.c.l.b16 %v2692
    %v2828 = vunpack.c.l.b16 %v2693
    %v2829 = vunpack.c.l.b16 %v2694
    %v2830 = vunpack.c.l.b16 %v2695
    %v2831 = vunpack.c.l.b16 %v2696
    %v2832 = vunpack.c.l.b16 %v2697
    %v2833 = vunpack.c.l.b16 %v2698
    %v2834 = vunpack.c.l.b16 %v2699
    %v2835 = vunpack.c.l.b16 %v2700
    %v2836 = vunpack.c.l.b16 %v2701
    %v2837 = vunpack.c.l.b16 %v2702
    %v2838 = vunpack.c.l.b16 %v2703
    %v2839 = vunpack.c.l.b16 %v2704
    %v2840 = vunpack.c.l.b16 %v2705
    %v2841 = vunpack.c.l.b16 %v2706
    %v2842 = vunpack.c.l.b16 %v2707
    %v2843 = vunpack.c.l.b16 %v2708
    %v2844 = vunpack.c.l.b16 %v2709
    %v2845 = vunpack.c.l.b16 %v2710
    %v2846 = vunpack.c.l.b16 %v2711
    %v2847 = vunpack.c.l.b16 %v2712
    %v2848 = vunpack.c.l.b16 %v2713
    %v2849 = vunpack.c.l.b16 %v2714
    %v2850 = vunpack.c.l.b16 %v2715
    %v2851 = vunpack.c.l.b16 %v2716
    %v2852 = vunpack.c.l.b16 %v2717
    %v2853 = vunpack.c.l.b16 %v2718
    %v2854 = vunpack.c.l.b16 %v2719
    %v2855 = vunpack.c.l.b16 %v2720
    %v2856 = vunpack.c.l.b16 %v2721
    %v2857 = vunpack.c.l.b16 %v2722
    %v2858 = vunpack.c.l.b16 %v2723
    %v2859 = vunpack.c.l.b16 %v2724
    %v2860 = vpack.c.b16 %v2797, %v2796
    %v2861 = vpack.c.b16 %v2799, %v2798
    %v2862 = vpack.c.b16 %v2801, %v2800
    %v2863 = vpack.c.b16 %v2803, %v2802
    %v2864 = vpack.c.b16 %v2805, %v2804
    %v2865 = vpack.c.b16 %v2807, %v2806
    %v2866 = vpack.c.b16 %v2809, %v2808
    %v2867 = vpack.c.b16 %v2811, %v2810
    %v2868 = vpack.c.b16 %v2813, %v2812
    %v2869 = vpack.c.b16 %v2815, %v2814
    %v2870 = vpack.c.b16 %v2817, %v2816
    %v2871 = vpack.c.b16 %v2819, %v2818
    %v2872 = vpack.c.b16 %v2821, %v2820
    %v2873 = vpack.c.b16 %v2823, %v2822
    %v2874 = vpack.c.b16 %v2825, %v2824
    %v2875 = vpack.c.b16 %v2827, %v2826
    %v2876 = vpack.c.b16 %v2829, %v2828
    %v2877 = vpack.c.b16 %v2831, %v2830
    %v2878 = vpack.c.b16 %v2833, %v2832
    %v2879 = vpack.c.b16 %v2835, %v2834
    %v2880 = vpack.c.b16 %v2837, %v2836
    %v2881 = vpack.c.b16 %v2839, %v2838
    %v2882 = vpack.c.b16 %v2841, %v2840
    %v2883 = vpack.c.b16 %v2843, %v2842
    %v2884 = vpack.c.b16 %v2845, %v2844
    %v2885 = vpack.c.b16 %v2847, %v2846
    %v2886 = vpack.c.b16 %v2849, %v2848
    %v2887 = vpack.c.b16 %v2851, %v2850
    %v2888 = vpack.c.b16 %v2853, %v2852
    %v2889 = vpack.c.b16 %v2855, %v2854
    %v2890 = vpack.c.b16 %v2857, %v2856
    %v2891 = vpack.c.b16 %v2859, %v2858
    %2924 = vmatprep.subr.bf16.mxu0 0
    %2925 = vmatpush1.bf16.msra.mxu0 %v2860
    %2926 = vmatprep.subr.bf16.mxu0 0
    %2927 = vmatpush1.bf16.msra.mxu0 %v2861
    %2928 = vmatprep.subr.bf16.mxu0 0
    %2929 = vmatpush1.bf16.msra.mxu0 %v2862
    %2930 = vmatprep.subr.bf16.mxu0 0
    %2931 = vmatpush1.bf16.msra.mxu0 %v2863
    %2932 = vmatprep.subr.bf16.mxu0 0
    %2933 = vmatpush1.bf16.msra.mxu0 %v2864
    %2934 = vmatprep.subr.bf16.mxu0 0
    %2935 = vmatpush1.bf16.msra.mxu0 %v2865
    %2936 = vmatprep.subr.bf16.mxu0 0
    %2937 = vmatpush1.bf16.msra.mxu0 %v2866
    %2938 = vmatprep.subr.bf16.mxu0 0
    %2939 = vmatpush1.bf16.msra.mxu0 %v2867
    %2940 = vmatprep.subr.bf16.mxu0 0
    %2941 = vmatpush1.bf16.msra.mxu0 %v2868
    %2942 = vmatprep.subr.bf16.mxu0 0
    %2943 = vmatpush1.bf16.msra.mxu0 %v2869
    %2944 = vmatprep.subr.bf16.mxu0 0
    %2945 = vmatpush1.bf16.msra.mxu0 %v2870
    %2946 = vmatprep.subr.bf16.mxu0 0
    %2947 = vmatpush1.bf16.msra.mxu0 %v2871
    %2948 = vmatprep.subr.bf16.mxu0 0
    %2949 = vmatpush1.bf16.msra.mxu0 %v2872
    %2950 = vmatprep.subr.bf16.mxu0 0
    %2951 = vmatpush1.bf16.msra.mxu0 %v2873
    %2952 = vmatprep.subr.bf16.mxu0 0
    %2953 = vmatpush1.bf16.msra.mxu0 %v2874
    %2954 = vmatprep.subr.bf16.mxu0 0
    %2955 = vmatpush1.bf16.msra.mxu0 %v2875
    %2956 = vmatprep.mubr.bf16.mxu0 %v2612
    %2957 = vmatmul.mubr.bf16.gmra.mrb[0].mxu0 %v2611
    %v2958 = vpop.f32.mrb[0].mxu0
    %v2959 = vadd.f32 %v2730, %v2958
    %v2960 = vpop.f32.mrb[0].mxu0
    %v2961 = vpop.f32.mrb[0].mxu0
    %v2962 = vpop.f32.mrb[0].mxu0
    %2963 = vdwg.mxu0
    %2964 = vmatprep.subr.bf16.mxu0 0
    %2965 = vmatpush1.bf16.msra.mxu0 %v2876
    %2966 = vmatprep.subr.bf16.mxu0 0
    %2967 = vmatpush1.bf16.msra.mxu0 %v2877
    %2968 = vmatprep.subr.bf16.mxu0 0
    %2969 = vmatpush1.bf16.msra.mxu0 %v2878
    %2970 = vmatprep.subr.bf16.mxu0 0
    %2971 = vmatpush1.bf16.msra.mxu0 %v2879
    %2972 = vmatprep.subr.bf16.mxu0 0
    %2973 = vmatpush1.bf16.msra.mxu0 %v2880
    %2974 = vmatprep.subr.bf16.mxu0 0
    %2975 = vmatpush1.bf16.msra.mxu0 %v2881
    %2976 = vmatprep.subr.bf16.mxu0 0
    %2977 = vmatpush1.bf16.msra.mxu0 %v2882
    %2978 = vmatprep.subr.bf16.mxu0 0
    %2979 = vmatpush1.bf16.msra.mxu0 %v2883
    %2980 = vmatprep.subr.bf16.mxu0 0
    %2981 = vmatpush1.bf16.msra.mxu0 %v2884
    %2982 = vmatprep.subr.bf16.mxu0 0
    %2983 = vmatpush1.bf16.msra.mxu0 %v2885
    %2984 = vmatprep.subr.bf16.mxu0 0
    %2985 = vmatpush1.bf16.msra.mxu0 %v2886
    %2986 = vmatprep.subr.bf16.mxu0 0
    %2987 = vmatpush1.bf16.msra.mxu0 %v2887
    %2988 = vmatprep.subr.bf16.mxu0 0
    %2989 = vmatpush1.bf16.msra.mxu0 %v2888
    %2990 = vmatprep.subr.bf16.mxu0 0
    %2991 = vmatpush1.bf16.msra.mxu0 %v2889
    %2992 = vmatprep.subr.bf16.mxu0 0
    %2993 = vmatpush1.bf16.msra.mxu0 %v2890
    %2994 = vmatprep.subr.bf16.mxu0 0
    %2995 = vmatpush1.bf16.msra.mxu0 %v2891
    %2996 = vmatprep.mubr.bf16.mxu0 %v2614
    %2997 = vmatmul.mubr.bf16.gmra.mrb[0].mxu0 %v2613
    %v2998 = vpop.f32.mrb[0].mxu0
    %v2999 = vadd.f32 %v2959, %v2998
    %v3000 = vpop.f32.mrb[0].mxu0
    %v3001 = vpop.f32.mrb[0].mxu0
    %v3002 = vpop.f32.mrb[0].mxu0
    %3003 = vdwg.mxu0
    %3004 = vst [vmem:[#allocation7] sm:$0xff] %v2999
    // Predicated region
    $region46: #{head2_forward.1} parent=1 // pred_check
      _
    $region47: #{head2_forward.1} parent=1 // pred_check_branch
      %3006 = sbr.rel (0) target = $region49
    $region48: #{head2_forward.1} parent=1 // pred_region
      %s3008 = ssub.s32 128, 32
      %3009 = vsyncadd [#allocation4], %s3008
      %s3010 = sshll.u32 [#allocation7], 4
      %s3011 = int_to_ptr.vmem [resolvable:$true] %s3010
      %3016 = dma.vmem_to_hbm [thread:$0]  %s3011, 32, %s9, [#allocation4], 32, 32, 2
    $region49: #{head2_forward.1} parent=1 // pred_fallthru
      _
    // Predicated region
    $region50: #{head2_forward.1} parent=1 // pred_check
      _
    $region51: #{head2_forward.1} parent=1 // pred_check_branch
      %3018 = sbr.rel (0) target = $region53
    $region52: #{head2_forward.1} parent=1 // pred_region
      %s3020 = ssub.s32 256, 64
      %3021 = vsyncadd [#allocation9], %s3020
      %s3022 = sshll.u32 [#allocation8], 4
      %s3023 = int_to_ptr.vmem [resolvable:$true] %s3022
      %3028 = dma.vmem_to_hbm [thread:$0]  %s3023, 64, %s10, [#allocation9], 64, 64, 4
    $region53: #{head2_forward.1} parent=1 // pred_fallthru
      _
    // Predicated region
    $region54: #{head2_forward.1} parent=1 // pred_check
      _
    $region55: #{head2_forward.1} parent=1 // pred_check_branch
      %3030 = sbr.rel (0) target = $region57
    $region56: #{head2_forward.1} parent=1 // pred_region
      %3031 = dma.done [#allocation4], 128
    $region57: #{head2_forward.1} parent=1 // pred_fallthru
      _
    // Predicated region
    $region58: #{head2_forward.1} parent=1 // pred_check
      _
    $region59: #{head2_forward.1} parent=1 // pred_check_branch
      %3033 = sbr.rel (0) target = $region61
    $region60: #{head2_forward.1} parent=1 // pred_region
      %3034 = dma.done [#allocation9], 256
    $region61: #{head2_forward.1} parent=1 // pred_fallthru
      _
    %3035 = vsyncpa [#allocation3], 1
    %3036 = vsyncpa [#allocation6], 1
    %3037 = vsyncpa [#allocation4], 1
    %3038 = vsyncpa [#allocation9], 1

</llo_original>
